<compile_context>
chip_gen: v6e
topology: v6e:2x2x1
jax: 0.10.0
libtpu: 0.0.40
codegen_flags: <defaults>
</compile_context>

<pallas_src>
import numpy as np

import jax
import jax.numpy as jnp
from jax import lax
from jax.experimental import pallas as pl
from jax.experimental.pallas import tpu as pltpu


# ----------------------------------------------------------------------------
# Host-side constant operators / parameter repacking (trace-time only, tiny).
# ----------------------------------------------------------------------------
def _round_up(n, m):
    return (n + m - 1) // m * m


def _bilinear2x_matrix(n):
    """(2n, n) operator of torch.nn.Upsample(scale=2,'bilinear',align_corners=False)."""
    u = np.zeros((2 * n, n), np.float32)
    for i in range(n):
        u[2 * i, i] += 0.75
        u[2 * i, max(i - 1, 0)] += 0.25          # edge clamped
        u[2 * i + 1, i] += 0.75
        u[2 * i + 1, min(i + 1, n - 1)] += 0.25  # edge clamped
    return u


def _upsample_pad_operator(hin, win, margin):
    """(hin*win, S + 2*margin) operator: flattened input image -> flattened
    zero-padded (pad=1) 2x-bilinear-upsampled image on the padded grid,
    embedded with `margin` zero columns on both sides.  S=(2*hin+2)*(2*win+2)."""
    hp, wp = 2 * hin + 2, 2 * win + 2
    uh = np.zeros((hp, hin), np.float32)
    uh[1:-1] = _bilinear2x_matrix(hin)
    uw = np.zeros((wp, win), np.float32)
    uw[1:-1] = _bilinear2x_matrix(win)
    m = np.kron(uh, uw)                          # (hp*wp, hin*win), row-major
    s = hp * wp
    op = np.zeros((hin * win, s + 2 * margin), np.float32)
    op[:, margin:margin + s] = m.T
    return jnp.asarray(op)


def _interior_mask(hp, wp, margin):
    """(1, S + 2*margin) mask: 1 on the valid HxW interior of the padded grid,
    0 on the pad ring and on the extension margins."""
    m = np.zeros((hp, wp), np.float32)
    m[1:-1, 1:-1] = 1.0
    out = np.zeros((1, hp * wp + 2 * margin), np.float32)
    out[0, margin:margin + hp * wp] = m.reshape(-1)
    return jnp.asarray(out)


def _flatten_conv_weight(w_hwio, cin_p, cout_p):
    """HWIO (3,3,Cin,Cout) -> (cout_p, 9*cin_p), tap-major contraction order,
    zero-padded to aligned channel counts."""
    kh, kw, cin, cout = w_hwio.shape
    w = jnp.pad(w_hwio.astype(jnp.float32),
                ((0, 0), (0, 0), (0, cin_p - cin), (0, cout_p - cout)))
    w = jnp.transpose(w.reshape(kh * kw, cin_p, cout_p), (2, 0, 1))
    return w.reshape(cout_p, kh * kw * cin_p)


def _pad_channel_vec(v, n):
    return jnp.pad(v.astype(jnp.float32), (0, n - v.shape[0])).reshape(n, 1)


# ----------------------------------------------------------------------------
# Fused forward: one pallas_call, one grid step per image.
# ----------------------------------------------------------------------------
def upsample_module(x_nchw, params):
    """Forward pass of the PyTorch `Upsample` module. NCHW in, NCHW out."""
    n, c0, hin, win = x_nchw.shape
    c1 = params["w1"].shape[-1]
    c2 = params["w2"].shape[-1]

    h, w = 2 * hin, 2 * win
    hp, wp = h + 2, w + 2            # zero-padded (pad=1) upsampled grid
    s = hp * wp                      # flattened padded grid size (lane dim)
    e = wp + 1                       # >= max |dy*wp + dx|: margin -> taps are slices
    sin = hin * win
    l1 = s + 2 * e                   # conv1 output width / conv2 input width
    l2 = s + 4 * e                   # conv1 input width

    c0p = _round_up(c0, 8)           # sublane-aligned channel counts
    c1p = _round_up(c1, 8)

    up_op = _upsample_pad_operator(hin, win, 2 * e)        # (sin, l2)
    mask = _interior_mask(hp, wp, e)                       # (1, l1)
    w1 = _flatten_conv_weight(params["w1"], c0p, c1p)      # (c1p, 9*c0p)
    w2 = _flatten_conv_weight(params["w2"], c1p, c2)       # (c2, 9*c1p)
    b1 = _pad_channel_vec(params["b1"], c1p)               # (c1p, 1)
    b2 = _pad_channel_vec(params["b2"], c2)                # (c2, 1)
    a1 = _pad_channel_vec(params["a1"], c0p)               # (c0p, 1)
    a2 = _pad_channel_vec(params["a2"], c1p)               # (c1p, 1)

    # Channels on sublanes, flattened spatial on lanes (NCHW already flattens
    # this way -> no NCHW<->NHWC transposes anywhere).
    x_flat = jnp.pad(x_nchw.reshape(n, c0, sin).astype(jnp.float32),
                     ((0, 0), (0, c0p - c0), (0, 0)))

    def kernel(x_ref, up_ref, w1_ref, b1_ref, a1_ref,
               w2_ref, b2_ref, a2_ref, mask_ref, o_ref):

        def conv3x3(act, w_flat, out_width):
            # act:    (cin_p, out_width + 2*e) zero-margined flat padded grid
            # w_flat: (cout, 9*cin_p)          -> single K = 9*cin_p MXU matmul
            taps = [act[:, e + dy * wp + dx: e + dy * wp + dx + out_width]
                    for dy in (-1, 0, 1) for dx in (-1, 0, 1)]
            xcol = jnp.concatenate(taps, axis=0)            # (9*cin_p, out_width)
            return jnp.dot(w_flat, xcol, preferred_element_type=jnp.float32)

        # Bilinear 2x upsample + zero pad(1) + zero margins, as one matmul.
        x = x_ref[0]                                        # (c0p, sin)
        xup = jnp.dot(x, up_ref[...],
                      preferred_element_type=jnp.float32)   # (c0p, l2)

        # PReLU(a1): valid across the zero padding because PReLU(0) == 0.
        xup = jnp.where(xup > 0, xup, xup * a1_ref[...])

        # Conv1 (3x3, pad 1) + bias + PReLU(a2), evaluated on the e-extended grid.
        y1 = conv3x3(xup, w1_ref[...], l1) + b1_ref[...]    # (c1p, l1)
        y1 = jnp.where(y1 > 0, y1, y1 * a2_ref[...])
        # Zero everything outside the valid interior: this *is* conv2's zero
        # padding (and clears the garbage pad-ring / margin values).
        y1 = y1 * mask_ref[...]

        # Conv2 (3x3, pad 1) + bias.
        y2 = conv3x3(y1, w2_ref[...], s) + b2_ref[...]      # (c2, s)
        o_ref[0] = y2.astype(o_ref.dtype)

    out_flat = pl.pallas_call(
        kernel,
        out_shape=jax.ShapeDtypeStruct((n, c2, s), x_nchw.dtype),
        grid_spec=pltpu.PrefetchScalarGridSpec(
            num_scalar_prefetch=0,
            grid=(n,),
            in_specs=[
                pl.BlockSpec((1, c0p, sin), lambda i: (i, 0, 0)),
                pl.BlockSpec((sin, l2), lambda i: (0, 0)),
                pl.BlockSpec((c1p, 9 * c0p), lambda i: (0, 0)),
                pl.BlockSpec((c1p, 1), lambda i: (0, 0)),
                pl.BlockSpec((c0p, 1), lambda i: (0, 0)),
                pl.BlockSpec((c2, 9 * c1p), lambda i: (0, 0)),
                pl.BlockSpec((c2, 1), lambda i: (0, 0)),
                pl.BlockSpec((c1p, 1), lambda i: (0, 0)),
                pl.BlockSpec((1, l1), lambda i: (0, 0)),
            ],
            out_specs=pl.BlockSpec((1, c2, s), lambda i: (i, 0, 0)),
        ),
        compiler_params=pltpu.CompilerParams(
            dimension_semantics=("parallel",)),
    )(x_flat, up_op, w1, b1, a1, w2, b2, a2, mask)

    # Drop the pad ring: (N, C2, S) -> (N, C2, H, W).  Pure layout plumbing.
    return out_flat.reshape(n, c2, hp, wp)[:, :, 1:1 + h, 1:1 + w]


# ----------------------------------------------------------------------------
# Independent pure-JAX/XLA reference (for correctness check only).
# ----------------------------------------------------------------------------
def _upsample2x_along(x, axis):
    n = x.shape[axis]
    idx_prev = jnp.clip(jnp.arange(n) - 1, 0, n - 1)
    idx_next = jnp.clip(jnp.arange(n) + 1, 0, n - 1)
    prev = jnp.take(x, idx_prev, axis=axis)
    nxt = jnp.take(x, idx_next, axis=axis)
    even = 0.75 * x + 0.25 * prev
    odd = 0.75 * x + 0.25 * nxt
    out = jnp.stack([even, odd], axis=axis + 1)
    new_shape = list(x.shape)
    new_shape[axis] = 2 * n
    return out.reshape(new_shape)


def upsample_module_ref(x_nchw, params):
    def prelu(x, a):
        return jnp.where(x > 0, x, x * a[None, None, None, :])

    x = jnp.transpose(x_nchw, (0, 2, 3, 1))                 # NCHW -> NHWC
    x = _upsample2x_along(x, 1)
    x = _upsample2x_along(x, 2)
    x = prelu(x, params["a1"])
    x = lax.conv_general_dilated(
        x, params["w1"], (1, 1), "SAME",
        dimension_numbers=("NHWC", "HWIO", "NHWC")) + params["b1"]
    x = prelu(x, params["a2"])
    x = lax.conv_general_dilated(
        x, params["w2"], (1, 1), "SAME",
        dimension_numbers=("NHWC", "HWIO", "NHWC")) + params["b2"]
    return jnp.transpose(x, (0, 3, 1, 2))                   # NHWC -> NCHW


def init_params(key, int_channels):
    c0, c1, c2 = int_channels
    k1, k2, k3, k4 = jax.random.split(key, 4)
    return {
        "a1": jnp.full((c0,), 0.25, jnp.float32),   # PReLU init=0.25
        "w1": 0.1 * jax.random.normal(k1, (3, 3, c0, c1), jnp.float32),
        "b1": 0.1 * jax.random.normal(k2, (c1,), jnp.float32),
        "a2": jnp.full((c1,), 0.25, jnp.float32),
        "w2": 0.1 * jax.random.normal(k3, (3, 3, c1, c2), jnp.float32),
        "b2": 0.1 * jax.random.normal(k4, (c2,), jnp.float32),
    }


if __name__ == "__main__":
    key = jax.random.PRNGKey(0)
    kx, kp = jax.random.split(key)

    int_channels = [4, 8, 4]                                   # [C0, C1, C2]
    x = jax.random.normal(kx, (2, 4, 16, 16), jnp.float32)     # NCHW
    params = init_params(kp, int_channels)

    fwd = jax.jit(upsample_module)
    out = jax.block_until_ready(fwd(x, params))
    ref = jax.block_until_ready(upsample_module_ref(x, params))

    assert out.shape == (2, 4, 32, 32), out.shape
    # Tolerance sized for TPU default f32 matmul precision (bf16 MXU passes),
    # which may differ between the XLA reference convolutions and the fused
    # in-kernel MXU dots; genuine bugs would show up at O(0.1) error.
    np.testing.assert_allclose(np.asarray(out), np.asarray(ref),
                               rtol=5e-3, atol=5e-3)
    print("KERNEL_OK")
</pallas_src>

<mosaic_0001>
module attributes {stable_mosaic.version = 11 : i64} {
  func.func @kernel(%arg0: i32, %arg1: memref<1x8x256xf32, #tpu.memory_space<vmem>>, %arg2: memref<256x1296xf32, #tpu.memory_space<vmem>>, %arg3: memref<8x72xf32, #tpu.memory_space<vmem>>, %arg4: memref<8x1xf32, #tpu.memory_space<vmem>>, %arg5: memref<8x1xf32, #tpu.memory_space<vmem>>, %arg6: memref<4x72xf32, #tpu.memory_space<vmem>>, %arg7: memref<4x1xf32, #tpu.memory_space<vmem>>, %arg8: memref<8x1xf32, #tpu.memory_space<vmem>>, %arg9: memref<1x1226xf32, #tpu.memory_space<vmem>>, %arg10: memref<1x4x1156xf32, #tpu.memory_space<vmem>>) attributes {dimension_semantics = [#tpu.dimension_semantics<parallel>], iteration_bounds = array<i64: 2>, scalar_prefetch = 0 : i64, scratch_operands = 0 : i64, tpu.core_type = #tpu.core_type<tc>, window_params = [{transform_indices = @transform_0, window_bounds = array<i64: 1, 8, 256>}, {pipeline_mode = #tpu.pipeline_mode<synchronous>, transform_indices = @transform_1, window_bounds = array<i64: 256, 1296>}, {pipeline_mode = #tpu.pipeline_mode<synchronous>, transform_indices = @transform_2, window_bounds = array<i64: 8, 72>}, {pipeline_mode = #tpu.pipeline_mode<synchronous>, transform_indices = @transform_3, window_bounds = array<i64: 8, 1>}, {pipeline_mode = #tpu.pipeline_mode<synchronous>, transform_indices = @transform_4, window_bounds = array<i64: 8, 1>}, {pipeline_mode = #tpu.pipeline_mode<synchronous>, transform_indices = @transform_5, window_bounds = array<i64: 4, 72>}, {pipeline_mode = #tpu.pipeline_mode<synchronous>, transform_indices = @transform_6, window_bounds = array<i64: 4, 1>}, {pipeline_mode = #tpu.pipeline_mode<synchronous>, transform_indices = @transform_7, window_bounds = array<i64: 8, 1>}, {pipeline_mode = #tpu.pipeline_mode<synchronous>, transform_indices = @transform_8, window_bounds = array<i64: 1, 1226>}, {transform_indices = @transform_9, window_bounds = array<i64: 1, 4, 1156>}]} {
    %c0 = arith.constant 0 : index
    %c0_0 = arith.constant 0 : index
    %c0_1 = arith.constant 0 : index
    %0 = vector.load %arg1[%c0, %c0_0, %c0_1] : memref<1x8x256xf32, #tpu.memory_space<vmem>>, vector<1x8x256xf32>
    %1 = vector.shape_cast %0 : vector<1x8x256xf32> to vector<8x256xf32>
    %c0_2 = arith.constant 0 : index
    %c0_3 = arith.constant 0 : index
    %2 = vector.load %arg2[%c0_2, %c0_3] : memref<256x1296xf32, #tpu.memory_space<vmem>>, vector<256x1296xf32>
    %cst = arith.constant dense<0.000000e+00> : vector<8x1296xf32>
    %3 = tpu.matmul %1, %2, %cst {dimension_numbers = #tpu.dot_dimension_numbers<[1], [0], [0], [1], [0, 0, 1, 1], [], []>} : vector<8x256xf32>, vector<256x1296xf32>, vector<8x1296xf32> -> vector<8x1296xf32>
    %cst_4 = arith.constant 0.000000e+00 : f32
    %4 = vector.broadcast %cst_4 : f32 to vector<8x1296xf32>
    %5 = arith.cmpf ogt, %3, %4 : vector<8x1296xf32>
    %c0_5 = arith.constant 0 : index
    %c0_6 = arith.constant 0 : index
    %6 = vector.load %arg5[%c0_5, %c0_6] : memref<8x1xf32, #tpu.memory_space<vmem>>, vector<8x1xf32>
    %7 = vector.broadcast %6 : vector<8x1xf32> to vector<8x1296xf32>
    %8 = arith.mulf %3, %7 : vector<8x1296xf32>
    %9 = arith.select %5, %3, %8 : vector<8x1296xi1>, vector<8x1296xf32>
    %c0_7 = arith.constant 0 : index
    %c0_8 = arith.constant 0 : index
    %10 = vector.load %arg3[%c0_7, %c0_8] : memref<8x72xf32, #tpu.memory_space<vmem>>, vector<8x72xf32>
    %11 = vector.extract_strided_slice %9 {offsets = [0, 0], sizes = [8, 1226], strides = [1, 1]} : vector<8x1296xf32> to vector<8x1226xf32>
    %12 = vector.extract_strided_slice %9 {offsets = [0, 1], sizes = [8, 1226], strides = [1, 1]} : vector<8x1296xf32> to vector<8x1226xf32>
    %13 = vector.extract_strided_slice %9 {offsets = [0, 2], sizes = [8, 1226], strides = [1, 1]} : vector<8x1296xf32> to vector<8x1226xf32>
    %14 = vector.extract_strided_slice %9 {offsets = [0, 34], sizes = [8, 1226], strides = [1, 1]} : vector<8x1296xf32> to vector<8x1226xf32>
    %15 = vector.extract_strided_slice %9 {offsets = [0, 35], sizes = [8, 1226], strides = [1, 1]} : vector<8x1296xf32> to vector<8x1226xf32>
    %16 = vector.extract_strided_slice %9 {offsets = [0, 36], sizes = [8, 1226], strides = [1, 1]} : vector<8x1296xf32> to vector<8x1226xf32>
    %17 = vector.extract_strided_slice %9 {offsets = [0, 68], sizes = [8, 1226], strides = [1, 1]} : vector<8x1296xf32> to vector<8x1226xf32>
    %18 = vector.extract_strided_slice %9 {offsets = [0, 69], sizes = [8, 1226], strides = [1, 1]} : vector<8x1296xf32> to vector<8x1226xf32>
    %19 = vector.extract_strided_slice %9 {offsets = [0, 70], sizes = [8, 1226], strides = [1, 1]} : vector<8x1296xf32> to vector<8x1226xf32>
    %20 = tpu.concatenate %11, %12, %13, %14, %15, %16, %17, %18, %19 in 0 : vector<8x1226xf32>, vector<8x1226xf32>, vector<8x1226xf32>, vector<8x1226xf32>, vector<8x1226xf32>, vector<8x1226xf32>, vector<8x1226xf32>, vector<8x1226xf32>, vector<8x1226xf32> -> vector<72x1226xf32>
    %cst_9 = arith.constant dense<0.000000e+00> : vector<8x1226xf32>
    %21 = tpu.matmul %10, %20, %cst_9 {dimension_numbers = #tpu.dot_dimension_numbers<[1], [0], [0], [1], [0, 0, 1, 1], [], []>} : vector<8x72xf32>, vector<72x1226xf32>, vector<8x1226xf32> -> vector<8x1226xf32>
    %c0_10 = arith.constant 0 : index
    %c0_11 = arith.constant 0 : index
    %22 = vector.load %arg4[%c0_10, %c0_11] : memref<8x1xf32, #tpu.memory_space<vmem>>, vector<8x1xf32>
    %23 = vector.broadcast %22 : vector<8x1xf32> to vector<8x1226xf32>
    %24 = arith.addf %21, %23 : vector<8x1226xf32>
    %cst_12 = arith.constant 0.000000e+00 : f32
    %25 = vector.broadcast %cst_12 : f32 to vector<8x1226xf32>
    %26 = arith.cmpf ogt, %24, %25 : vector<8x1226xf32>
    %c0_13 = arith.constant 0 : index
    %c0_14 = arith.constant 0 : index
    %27 = vector.load %arg8[%c0_13, %c0_14] : memref<8x1xf32, #tpu.memory_space<vmem>>, vector<8x1xf32>
    %28 = vector.broadcast %27 : vector<8x1xf32> to vector<8x1226xf32>
    %29 = arith.mulf %24, %28 : vector<8x1226xf32>
    %30 = arith.select %26, %24, %29 : vector<8x1226xi1>, vector<8x1226xf32>
    %c0_15 = arith.constant 0 : index
    %c0_16 = arith.constant 0 : index
    %31 = vector.load %arg9[%c0_15, %c0_16] : memref<1x1226xf32, #tpu.memory_space<vmem>>, vector<1x1226xf32>
    %32 = vector.broadcast %31 : vector<1x1226xf32> to vector<8x1226xf32>
    %33 = arith.mulf %30, %32 : vector<8x1226xf32>
    %c0_17 = arith.constant 0 : index
    %c0_18 = arith.constant 0 : index
    %34 = vector.load %arg6[%c0_17, %c0_18] : memref<4x72xf32, #tpu.memory_space<vmem>>, vector<4x72xf32>
    %35 = vector.extract_strided_slice %33 {offsets = [0, 0], sizes = [8, 1156], strides = [1, 1]} : vector<8x1226xf32> to vector<8x1156xf32>
    %36 = vector.extract_strided_slice %33 {offsets = [0, 1], sizes = [8, 1156], strides = [1, 1]} : vector<8x1226xf32> to vector<8x1156xf32>
    %37 = vector.extract_strided_slice %33 {offsets = [0, 2], sizes = [8, 1156], strides = [1, 1]} : vector<8x1226xf32> to vector<8x1156xf32>
    %38 = vector.extract_strided_slice %33 {offsets = [0, 34], sizes = [8, 1156], strides = [1, 1]} : vector<8x1226xf32> to vector<8x1156xf32>
    %39 = vector.extract_strided_slice %33 {offsets = [0, 35], sizes = [8, 1156], strides = [1, 1]} : vector<8x1226xf32> to vector<8x1156xf32>
    %40 = vector.extract_strided_slice %33 {offsets = [0, 36], sizes = [8, 1156], strides = [1, 1]} : vector<8x1226xf32> to vector<8x1156xf32>
    %41 = vector.extract_strided_slice %33 {offsets = [0, 68], sizes = [8, 1156], strides = [1, 1]} : vector<8x1226xf32> to vector<8x1156xf32>
    %42 = vector.extract_strided_slice %33 {offsets = [0, 69], sizes = [8, 1156], strides = [1, 1]} : vector<8x1226xf32> to vector<8x1156xf32>
    %43 = vector.extract_strided_slice %33 {offsets = [0, 70], sizes = [8, 1156], strides = [1, 1]} : vector<8x1226xf32> to vector<8x1156xf32>
    %44 = tpu.concatenate %35, %36, %37, %38, %39, %40, %41, %42, %43 in 0 : vector<8x1156xf32>, vector<8x1156xf32>, vector<8x1156xf32>, vector<8x1156xf32>, vector<8x1156xf32>, vector<8x1156xf32>, vector<8x1156xf32>, vector<8x1156xf32>, vector<8x1156xf32> -> vector<72x1156xf32>
    %cst_19 = arith.constant dense<0.000000e+00> : vector<4x1156xf32>
    %45 = tpu.matmul %34, %44, %cst_19 {dimension_numbers = #tpu.dot_dimension_numbers<[1], [0], [0], [1], [0, 0, 1, 1], [], []>} : vector<4x72xf32>, vector<72x1156xf32>, vector<4x1156xf32> -> vector<4x1156xf32>
    %c0_20 = arith.constant 0 : index
    %c0_21 = arith.constant 0 : index
    %46 = vector.load %arg7[%c0_20, %c0_21] : memref<4x1xf32, #tpu.memory_space<vmem>>, vector<4x1xf32>
    %47 = vector.broadcast %46 : vector<4x1xf32> to vector<4x1156xf32>
    %48 = arith.addf %45, %47 : vector<4x1156xf32>
    %c0_22 = arith.constant 0 : index
    %c0_23 = arith.constant 0 : index
    %c0_24 = arith.constant 0 : index
    %49 = vector.load %arg10[%c0_22, %c0_23, %c0_24] : memref<1x4x1156xf32, #tpu.memory_space<vmem>>, vector<1x4x1156xf32>
    %50 = vector.shape_cast %49 : vector<1x4x1156xf32> to vector<4x1156xf32>
    %51 = vector.shape_cast %48 : vector<4x1156xf32> to vector<1x4x1156xf32>
    tpu.vector_store %arg10[%c0_22, %c0_23, %c0_24], %51 {strides = array<i32>} : memref<1x4x1156xf32, #tpu.memory_space<vmem>>, vector<1x4x1156xf32>,
    return
  }
  func.func @transform_0(%arg0: i32) -> (i32, i32, i32) {
    %c0_i32 = arith.constant 0 : i32
    %c0_i32_0 = arith.constant 0 : i32
    %c0_i32_1 = arith.constant 0 : i32
    return %arg0, %c0_i32, %c0_i32_0 : i32, i32, i32
  }
  func.func @transform_1(%arg0: i32) -> (i32, i32) {
    %c0_i32 = arith.constant 0 : i32
    %c0_i32_0 = arith.constant 0 : i32
    %c0_i32_1 = arith.constant 0 : i32
    return %c0_i32, %c0_i32_0 : i32, i32
  }
  func.func @transform_2(%arg0: i32) -> (i32, i32) {
    %c0_i32 = arith.constant 0 : i32
    %c0_i32_0 = arith.constant 0 : i32
    %c0_i32_1 = arith.constant 0 : i32
    return %c0_i32, %c0_i32_0 : i32, i32
  }
  func.func @transform_3(%arg0: i32) -> (i32, i32) {
    %c0_i32 = arith.constant 0 : i32
    %c0_i32_0 = arith.constant 0 : i32
    %c0_i32_1 = arith.constant 0 : i32
    return %c0_i32, %c0_i32_0 : i32, i32
  }
  func.func @transform_4(%arg0: i32) -> (i32, i32) {
    %c0_i32 = arith.constant 0 : i32
    %c0_i32_0 = arith.constant 0 : i32
    %c0_i32_1 = arith.constant 0 : i32
    return %c0_i32, %c0_i32_0 : i32, i32
  }
  func.func @transform_5(%arg0: i32) -> (i32, i32) {
    %c0_i32 = arith.constant 0 : i32
    %c0_i32_0 = arith.constant 0 : i32
    %c0_i32_1 = arith.constant 0 : i32
    return %c0_i32, %c0_i32_0 : i32, i32
  }
  func.func @transform_6(%arg0: i32) -> (i32, i32) {
    %c0_i32 = arith.constant 0 : i32
    %c0_i32_0 = arith.constant 0 : i32
    %c0_i32_1 = arith.constant 0 : i32
    return %c0_i32, %c0_i32_0 : i32, i32
  }
  func.func @transform_7(%arg0: i32) -> (i32, i32) {
    %c0_i32 = arith.constant 0 : i32
    %c0_i32_0 = arith.constant 0 : i32
    %c0_i32_1 = arith.constant 0 : i32
    return %c0_i32, %c0_i32_0 : i32, i32
  }
  func.func @transform_8(%arg0: i32) -> (i32, i32) {
    %c0_i32 = arith.constant 0 : i32
    %c0_i32_0 = arith.constant 0 : i32
    %c0_i32_1 = arith.constant 0 : i32
    return %c0_i32, %c0_i32_0 : i32, i32
  }
  func.func @transform_9(%arg0: i32) -> (i32, i32, i32) {
    %c0_i32 = arith.constant 0 : i32
    %c0_i32_0 = arith.constant 0 : i32
    %c0_i32_1 = arith.constant 0 : i32
    return %arg0, %c0_i32, %c0_i32_0 : i32, i32, i32
  }
}

</mosaic_0001>

<llo_original>
// kernel: upsample_module.1
$region0: #{upsample_module.1}
  #allocation0 [shape = 'u32[]', space=smem, size = 0x4, offset = 0x4, fixed_abs, tag = 'smem constant byte address 0x4 - core index']
  #allocation1 [shape = 'u32[144,128]{1,0:T(1,128)}', space=vmem, size = 0x12000, scoped, tag = 'internal scratch']
  %s0 = inlined_call_operand.vmem [shape: f32[2,8,256], index: 0, kind: input, shape index: {}]
  %s1 = inlined_call_operand.hbm [shape: f32[256,1296], index: 1, kind: input, shape index: {}]
  %s2 = inlined_call_operand.vmem [shape: f32[8,72], index: 2, kind: input, shape index: {}]
  %s3 = inlined_call_operand.vmem [shape: f32[8,1], index: 3, kind: input, shape index: {}]
  %s4 = inlined_call_operand.vmem [shape: f32[8,1], index: 4, kind: input, shape index: {}]
  %s5 = inlined_call_operand.vmem [shape: f32[4,72], index: 5, kind: input, shape index: {}]
  %s6 = inlined_call_operand.vmem [shape: f32[4,1], index: 6, kind: input, shape index: {}]
  %s7 = inlined_call_operand.vmem [shape: f32[8,1], index: 7, kind: input, shape index: {}]
  %s8 = inlined_call_operand.hbm [shape: f32[1,1226], index: 8, kind: input, shape index: {}]
  %s9 = inlined_call_operand.vmem [shape: f32[2,4,1156], index: 9, kind: output, shape index: {}]
  %s10 = sld [smem:[#allocation0]]
  $region77: #{upsample_module.1} parent=0
    _
  %s12 = ssub.s32 1, %s10
  %s13 = scalar_select 0, %s12, %s10
  $region1: #{upsample_module.1} parent=0
    #allocation2 [shape = 'u8[1441792]{0}', space=vmem, size = 0x160000, scoped, tag = 'input window, operand 1, single buffered']
    #allocation3 [shape = 's32[2]{0}', space=sflag, size = 0x8, scoped, tag = 'scoped memory for upsample_module.1']
    #allocation4 [shape = 'u8[5120]{0}', space=vmem, size = 0x1400, scoped, tag = 'input window, operand 8, single buffered']
    #allocation5 [shape = 's32[1]{0}', space=sflag, size = 0x4, scoped, tag = 'scoped memory for upsample_module.1']
    %14 = vsyncpa [#allocation3], 0
    %15 = vsyncpa [#allocation5], 0
    loop: start=0, step=1, limit=4
    $region2: #{upsample_module.1} parent=1 // loop_pre_header
      _
    $region3: #{upsample_module.1} parent=1 // loop_header
      %s17 = sphi 0, %s21
      %p18 = scmp.ge.s32.totalorder %s17, 4
      %s27 = sphi 0, %s29
      %s30 = sphi 0, %s27
      %s31 = sphi 0, %s30
      %s47 = sphi 0, %s31
      %s51 = sphi 0, %s51
      %s53 = sphi 0, %s51
      %s54 = sphi 0, %s53
      %s68 = sphi 0, %s54
      %s72 = sphi 0, %s72
      %s74 = sphi 0, %s72
      %s75 = sphi 0, %s74
      %s89 = sphi 0, %s75
      %s93 = sphi 0, %s93
      %s95 = sphi 0, %s93
      %s96 = sphi 0, %s95
      %s110 = sphi 0, %s96
      %s114 = sphi 0, %s114
      %s116 = sphi 0, %s114
      %s117 = sphi 0, %s116
      %s131 = sphi 0, %s117
      %s135 = sphi 0, %s135
      %s137 = sphi 0, %s135
      %s138 = sphi 0, %s137
      %s152 = sphi 0, %s138
      %s156 = sphi 0, %s156
      %s158 = sphi 0, %s156
      %s159 = sphi 0, %s158
      %s173 = sphi 0, %s159
      %s177 = sphi 0, %s177
      %s179 = sphi 0, %s177
      %s180 = sphi 0, %s179
      %s194 = sphi 0, %s180
      %s198 = sphi 0, %s198
      %s200 = sphi 0, %s198
      %s201 = sphi 0, %s200
      %s215 = sphi 0, %s201
      %s221 = sphi 0, %s223
      %s224 = sphi 0, %s221
      %s225 = sphi 0, %s224
      %s241 = sphi 0, %s225
    $region4: #{upsample_module.1} parent=1 // loop_header_branch
      %20 = sbr.rel (%p18) target = $region8
    $region5: #{upsample_module.1} parent=1 // loop_body
      %s22 = ssub.s32 %s17, 1
      %s23 = ssub.s32 %s17, 2
      %s24 = sadd.s32 %s17, 1
      %s25 = ssub.s32 %s17, %s24
      %p26 = scmp.eq.s32.totalorder %s25, 0
      %s28 = sadd.s32 %s27, 1
      %s29 = scalar_select %p26, %s27, %s28
      %p32 = pneg %p26
      %p33 = scmp.eq.s32.totalorder %s17, 1
      %p34 = por %p32, %p33
      %p35 = scmp.ne.s32.totalorder %s27, %s30
      %p36 = scmp.eq.s32.totalorder %s17, 0
      %p37 = por %p35, %p36
      %p38 = scmp.ne.s32.totalorder %s27, %s30
      %p39 = scmp.eq.s32.totalorder %s22, 1
      %p40 = por %p38, %p39
      %p41 = scmp.ne.s32.totalorder %s30, %s31
      %p42 = scmp.eq.s32.totalorder %s22, 0
      %p43 = por %p41, %p42
      %p44 = scmp.ne.s32.totalorder %s30, %s31
      %p45 = scmp.eq.s32.totalorder %s23, 1
      %p46 = por %p44, %p45
      %p48 = scmp.ne.s32.totalorder %s31, %s47
      %p49 = scmp.eq.s32.totalorder %s23, 0
      %p50 = por %p48, %p49
      %s52 = sadd.s32 %s51, 1
      %p55 = scmp.eq.s32.totalorder %s17, 1
      %p56 = scmp.ne.s32.totalorder %s51, %s53
      %p57 = scmp.eq.s32.totalorder %s17, 0
      %p58 = por %p56, %p57
      %p59 = scmp.ne.s32.totalorder %s51, %s53
      %p60 = scmp.eq.s32.totalorder %s22, 1
      %p61 = por %p59, %p60
      %p62 = scmp.ne.s32.totalorder %s53, %s54
      %p63 = scmp.eq.s32.totalorder %s22, 0
      %p64 = por %p62, %p63
      %p65 = scmp.ne.s32.totalorder %s53, %s54
      %p66 = scmp.eq.s32.totalorder %s23, 1
      %p67 = por %p65, %p66
      %p69 = scmp.ne.s32.totalorder %s54, %s68
      %p70 = scmp.eq.s32.totalorder %s23, 0
      %p71 = por %p69, %p70
      %s73 = sadd.s32 %s72, 1
      %p76 = scmp.eq.s32.totalorder %s17, 1
      %p77 = scmp.ne.s32.totalorder %s72, %s74
      %p78 = scmp.eq.s32.totalorder %s17, 0
      %p79 = por %p77, %p78
      %p80 = scmp.ne.s32.totalorder %s72, %s74
      %p81 = scmp.eq.s32.totalorder %s22, 1
      %p82 = por %p80, %p81
      %p83 = scmp.ne.s32.totalorder %s74, %s75
      %p84 = scmp.eq.s32.totalorder %s22, 0
      %p85 = por %p83, %p84
      %p86 = scmp.ne.s32.totalorder %s74, %s75
      %p87 = scmp.eq.s32.totalorder %s23, 1
      %p88 = por %p86, %p87
      %p90 = scmp.ne.s32.totalorder %s75, %s89
      %p91 = scmp.eq.s32.totalorder %s23, 0
      %p92 = por %p90, %p91
      %s94 = sadd.s32 %s93, 1
      %p97 = scmp.eq.s32.totalorder %s17, 1
      %p98 = scmp.ne.s32.totalorder %s93, %s95
      %p99 = scmp.eq.s32.totalorder %s17, 0
      %p100 = por %p98, %p99
      %p101 = scmp.ne.s32.totalorder %s93, %s95
      %p102 = scmp.eq.s32.totalorder %s22, 1
      %p103 = por %p101, %p102
      %p104 = scmp.ne.s32.totalorder %s95, %s96
      %p105 = scmp.eq.s32.totalorder %s22, 0
      %p106 = por %p104, %p105
      %p107 = scmp.ne.s32.totalorder %s95, %s96
      %p108 = scmp.eq.s32.totalorder %s23, 1
      %p109 = por %p107, %p108
      %p111 = scmp.ne.s32.totalorder %s96, %s110
      %p112 = scmp.eq.s32.totalorder %s23, 0
      %p113 = por %p111, %p112
      %s115 = sadd.s32 %s114, 1
      %p118 = scmp.eq.s32.totalorder %s17, 1
      %p119 = scmp.ne.s32.totalorder %s114, %s116
      %p120 = scmp.eq.s32.totalorder %s17, 0
      %p121 = por %p119, %p120
      %p122 = scmp.ne.s32.totalorder %s114, %s116
      %p123 = scmp.eq.s32.totalorder %s22, 1
      %p124 = por %p122, %p123
      %p125 = scmp.ne.s32.totalorder %s116, %s117
      %p126 = scmp.eq.s32.totalorder %s22, 0
      %p127 = por %p125, %p126
      %p128 = scmp.ne.s32.totalorder %s116, %s117
      %p129 = scmp.eq.s32.totalorder %s23, 1
      %p130 = por %p128, %p129
      %p132 = scmp.ne.s32.totalorder %s117, %s131
      %p133 = scmp.eq.s32.totalorder %s23, 0
      %p134 = por %p132, %p133
      %s136 = sadd.s32 %s135, 1
      %p139 = scmp.eq.s32.totalorder %s17, 1
      %p140 = scmp.ne.s32.totalorder %s135, %s137
      %p141 = scmp.eq.s32.totalorder %s17, 0
      %p142 = por %p140, %p141
      %p143 = scmp.ne.s32.totalorder %s135, %s137
      %p144 = scmp.eq.s32.totalorder %s22, 1
      %p145 = por %p143, %p144
      %p146 = scmp.ne.s32.totalorder %s137, %s138
      %p147 = scmp.eq.s32.totalorder %s22, 0
      %p148 = por %p146, %p147
      %p149 = scmp.ne.s32.totalorder %s137, %s138
      %p150 = scmp.eq.s32.totalorder %s23, 1
      %p151 = por %p149, %p150
      %p153 = scmp.ne.s32.totalorder %s138, %s152
      %p154 = scmp.eq.s32.totalorder %s23, 0
      %p155 = por %p153, %p154
      %s157 = sadd.s32 %s156, 1
      %p160 = scmp.eq.s32.totalorder %s17, 1
      %p161 = scmp.ne.s32.totalorder %s156, %s158
      %p162 = scmp.eq.s32.totalorder %s17, 0
      %p163 = por %p161, %p162
      %p164 = scmp.ne.s32.totalorder %s156, %s158
      %p165 = scmp.eq.s32.totalorder %s22, 1
      %p166 = por %p164, %p165
      %p167 = scmp.ne.s32.totalorder %s158, %s159
      %p168 = scmp.eq.s32.totalorder %s22, 0
      %p169 = por %p167, %p168
      %p170 = scmp.ne.s32.totalorder %s158, %s159
      %p171 = scmp.eq.s32.totalorder %s23, 1
      %p172 = por %p170, %p171
      %p174 = scmp.ne.s32.totalorder %s159, %s173
      %p175 = scmp.eq.s32.totalorder %s23, 0
      %p176 = por %p174, %p175
      %s178 = sadd.s32 %s177, 1
      %p181 = scmp.eq.s32.totalorder %s17, 1
      %p182 = scmp.ne.s32.totalorder %s177, %s179
      %p183 = scmp.eq.s32.totalorder %s17, 0
      %p184 = por %p182, %p183
      %p185 = scmp.ne.s32.totalorder %s177, %s179
      %p186 = scmp.eq.s32.totalorder %s22, 1
      %p187 = por %p185, %p186
      %p188 = scmp.ne.s32.totalorder %s179, %s180
      %p189 = scmp.eq.s32.totalorder %s22, 0
      %p190 = por %p188, %p189
      %p191 = scmp.ne.s32.totalorder %s179, %s180
      %p192 = scmp.eq.s32.totalorder %s23, 1
      %p193 = por %p191, %p192
      %p195 = scmp.ne.s32.totalorder %s180, %s194
      %p196 = scmp.eq.s32.totalorder %s23, 0
      %p197 = por %p195, %p196
      %s199 = sadd.s32 %s198, 1
      %p202 = scmp.eq.s32.totalorder %s17, 1
      %p203 = scmp.ne.s32.totalorder %s198, %s200
      %p204 = scmp.eq.s32.totalorder %s17, 0
      %p205 = por %p203, %p204
      %p206 = scmp.ne.s32.totalorder %s198, %s200
      %p207 = scmp.eq.s32.totalorder %s22, 1
      %p208 = por %p206, %p207
      %p209 = scmp.ne.s32.totalorder %s200, %s201
      %p210 = scmp.eq.s32.totalorder %s22, 0
      %p211 = por %p209, %p210
      %p212 = scmp.ne.s32.totalorder %s200, %s201
      %p213 = scmp.eq.s32.totalorder %s23, 1
      %p214 = por %p212, %p213
      %p216 = scmp.ne.s32.totalorder %s201, %s215
      %p217 = scmp.eq.s32.totalorder %s23, 0
      %p218 = por %p216, %p217
      %s219 = ssub.s32 %s17, %s24
      %p220 = scmp.eq.s32.totalorder %s219, 0
      %s222 = sadd.s32 %s221, 1
      %s223 = scalar_select %p220, %s221, %s222
      %p226 = pneg %p220
      %p227 = scmp.eq.s32.totalorder %s17, 1
      %p228 = por %p226, %p227
      %p229 = scmp.ne.s32.totalorder %s221, %s224
      %p230 = scmp.eq.s32.totalorder %s17, 0
      %p231 = por %p229, %p230
      %p232 = scmp.ne.s32.totalorder %s221, %s224
      %p233 = scmp.eq.s32.totalorder %s22, 1
      %p234 = por %p232, %p233
      %p235 = scmp.ne.s32.totalorder %s224, %s225
      %p236 = scmp.eq.s32.totalorder %s22, 0
      %p237 = por %p235, %p236
      %p238 = scmp.ne.s32.totalorder %s224, %s225
      %p239 = scmp.eq.s32.totalorder %s23, 1
      %p240 = por %p238, %p239
      %p242 = scmp.ne.s32.totalorder %s225, %s241
      %p243 = scmp.eq.s32.totalorder %s23, 0
      %p244 = por %p242, %p243
      %p245 = scmp.le.s32.totalorder 1, %s17
      %p246 = scmp.lt.s32.totalorder %s17, 3
      %p247 = pnand %p245, %p246
      %p248 = pneg %p247
      // Predicated region
      $region9: #{upsample_module.1} parent=5 // pred_check
        _
      $region10: #{upsample_module.1} parent=5 // pred_check_branch
        %250 = sbr.rel (%p247) target = $region12
      $region11: #{upsample_module.1} parent=5 // pred_region
        %s251 = ssub.s32 %s17, 1
        // Predicated region
        $region13: #{upsample_module.1} parent=11 // pred_check
          %p252 = pneg %p64
        $region14: #{upsample_module.1} parent=11 // pred_check_branch
          %254 = sbr.rel (%p252) target = $region16
        $region15: #{upsample_module.1} parent=11 // pred_region
          %s256 = ssub.s32 45056, 45056
          %257 = vsyncadd [#allocation3], %s256
          %s258 = sshll.u32 [#allocation2], 4
          %s259 = int_to_ptr.vmem [resolvable:$true] %s258
          %264 = dma.hbm_to_vmem [thread:$0]  %s1, 45056, %s259, [#allocation3], 1408, 1408, 88
        $region16: #{upsample_module.1} parent=11 // pred_fallthru
          _
        // Predicated region
        $region17: #{upsample_module.1} parent=11 // pred_check
          %p265 = pneg %p85
        $region18: #{upsample_module.1} parent=11 // pred_check_branch
          %267 = sbr.rel (%p265) target = $region20
        $region19: #{upsample_module.1} parent=11 // pred_region
          _
        $region20: #{upsample_module.1} parent=11 // pred_fallthru
          _
        // Predicated region
        $region21: #{upsample_module.1} parent=11 // pred_check
          %p268 = pneg %p106
        $region22: #{upsample_module.1} parent=11 // pred_check_branch
          %270 = sbr.rel (%p268) target = $region24
        $region23: #{upsample_module.1} parent=11 // pred_region
          _
        $region24: #{upsample_module.1} parent=11 // pred_fallthru
          _
        // Predicated region
        $region25: #{upsample_module.1} parent=11 // pred_check
          %p271 = pneg %p127
        $region26: #{upsample_module.1} parent=11 // pred_check_branch
          %273 = sbr.rel (%p271) target = $region28
        $region27: #{upsample_module.1} parent=11 // pred_region
          _
        $region28: #{upsample_module.1} parent=11 // pred_fallthru
          _
        // Predicated region
        $region29: #{upsample_module.1} parent=11 // pred_check
          %p274 = pneg %p148
        $region30: #{upsample_module.1} parent=11 // pred_check_branch
          %276 = sbr.rel (%p274) target = $region32
        $region31: #{upsample_module.1} parent=11 // pred_region
          _
        $region32: #{upsample_module.1} parent=11 // pred_fallthru
          _
        // Predicated region
        $region33: #{upsample_module.1} parent=11 // pred_check
          %p277 = pneg %p169
        $region34: #{upsample_module.1} parent=11 // pred_check_branch
          %279 = sbr.rel (%p277) target = $region36
        $region35: #{upsample_module.1} parent=11 // pred_region
          _
        $region36: #{upsample_module.1} parent=11 // pred_fallthru
          _
        // Predicated region
        $region37: #{upsample_module.1} parent=11 // pred_check
          %p280 = pneg %p190
        $region38: #{upsample_module.1} parent=11 // pred_check_branch
          %282 = sbr.rel (%p280) target = $region40
        $region39: #{upsample_module.1} parent=11 // pred_region
          _
        $region40: #{upsample_module.1} parent=11 // pred_fallthru
          _
        // Predicated region
        $region41: #{upsample_module.1} parent=11 // pred_check
          %p283 = pneg %p211
        $region42: #{upsample_module.1} parent=11 // pred_check_branch
          %285 = sbr.rel (%p283) target = $region44
        $region43: #{upsample_module.1} parent=11 // pred_region
          %s287 = ssub.s32 160, 160
          %288 = vsyncadd [#allocation5], %s287
          %s290 = sshll.u32 [#allocation4], 4
          %s291 = int_to_ptr.vmem [resolvable:$true] %s290
          %293 = dma.hbm_to_vmem [thread:$0]  %s8, 160, %s291, [#allocation5]
        $region44: #{upsample_module.1} parent=11 // pred_fallthru
          _
      $region12: #{upsample_module.1} parent=5 // pred_fallthru
        _
      %p294 = scmp.lt.s32.totalorder %s17, 2
      // Predicated region
      $region45: #{upsample_module.1} parent=5 // pred_check
        %p295 = pneg %p294
      $region46: #{upsample_module.1} parent=5 // pred_check_branch
        %297 = sbr.rel (%p295) target = $region48
      $region47: #{upsample_module.1} parent=5 // pred_region
        // Predicated region
        $region49: #{upsample_module.1} parent=47 // pred_check
          %p298 = pneg %p37
        $region50: #{upsample_module.1} parent=47 // pred_check_branch
          %300 = sbr.rel (%p298) target = $region52
        $region51: #{upsample_module.1} parent=47 // pred_region
          %p301 = scmp.lt.s32.totalorder %s17, 1
          %s302 = scalar_select %p301, %s17, 1
          %s303 = smul.addr %s302, 2
          %s304 = smul.addr %s303, 8
          %s305 = scalar_lea.vmem %s0, %s304
        $region52: #{upsample_module.1} parent=47 // pred_fallthru
          _
      $region48: #{upsample_module.1} parent=5 // pred_fallthru
        _
      %p306 = scmp.le.s32.totalorder 1, %s17
      %p307 = scmp.lt.s32.totalorder %s17, 3
      %p308 = pnand %p306, %p307
      %p309 = pneg %p308
      // Predicated region
      $region53: #{upsample_module.1} parent=5 // pred_check
        _
      $region54: #{upsample_module.1} parent=5 // pred_check_branch
        %311 = sbr.rel (%p308) target = $region56
      $region55: #{upsample_module.1} parent=5 // pred_region
        %s312 = ssub.s32 %s17, 1
        // Predicated region
        $region57: #{upsample_module.1} parent=55 // pred_check
          %p313 = pneg %p64
        $region58: #{upsample_module.1} parent=55 // pred_check_branch
          %315 = sbr.rel (%p313) target = $region60
        $region59: #{upsample_module.1} parent=55 // pred_region
          %316 = dma.done [#allocation3], 45056
        $region60: #{upsample_module.1} parent=55 // pred_fallthru
          _
        // Predicated region
        $region61: #{upsample_module.1} parent=55 // pred_check
          %p317 = pneg %p211
        $region62: #{upsample_module.1} parent=55 // pred_check_branch
          %319 = sbr.rel (%p317) target = $region64
        $region63: #{upsample_module.1} parent=55 // pred_region
          %320 = dma.done [#allocation5], 160
        $region64: #{upsample_module.1} parent=55 // pred_fallthru
          _
        %p321 = scmp.lt.s32.totalorder %s22, 1
        %s322 = scalar_select %p321, %s22, 1
        %s323 = smul.addr %s322, 2
        %s324 = smul.addr %s323, 8
        %s325 = scalar_lea.vmem %s0, %s324
        %p326 = pneg %p43
        %p327 = pneg %p40
        %p328 = pneg %p64
        %p329 = pneg %p61
        %p330 = pneg %p85
        %p331 = pneg %p82
        %p332 = pneg %p106
        %p333 = pneg %p103
        %p334 = pneg %p127
        %p335 = pneg %p124
        %p336 = pneg %p148
        %p337 = pneg %p145
        %p338 = pneg %p169
        %p339 = pneg %p166
        %p340 = pneg %p190
        %p341 = pneg %p187
        %p342 = pneg %p211
        %p343 = pneg %p208
        %p344 = pneg %p237
        %p345 = pneg %p234
        %p346 = scmp.lt.s32.totalorder %s22, 1
        %s347 = scalar_select %p346, %s22, 1
        %s348 = smul.addr %s347, 10
        %s349 = smul.addr %s348, 4
        %s350 = scalar_lea.vmem %s9, %s349
        %p351 = scmp.lt.s32.totalorder %s22, 1
        %s352 = scalar_select %p351, %s22, 1
        %s353 = smul.addr %s352, 2
        %s354 = smul.addr %s353, 8
        %s355 = scalar_lea.vmem %s0, %s354
        %p356 = scmp.lt.s32.totalorder %s22, 1
        %s357 = scalar_select %p356, %s22, 1
        %s358 = smul.addr %s357, 10
        %s359 = smul.addr %s358, 4
        %s360 = scalar_lea.vmem %s9, %s359
        %v361 = vld [vmem:[%s355] sm:$0xff]
        %v362 = vld [vmem:[%s355 + $0x8] sm:$0xff]
        %v363 = vld [vmem:[#allocation2] sm:$0xff]
        %v364 = vld [vmem:[#allocation2 + $0x8] sm:$0xff]
        %v365 = vld [vmem:[#allocation2 + $0x10] sm:$0xff]
        %v366 = vld [vmem:[#allocation2 + $0x18] sm:$0xff]
        %v367 = vld [vmem:[#allocation2 + $0x20] sm:$0xff]
        %v368 = vld [vmem:[#allocation2 + $0x28] sm:$0xff]
        %v369 = vld [vmem:[#allocation2 + $0x30] sm:$0xff]
        %v370 = vld [vmem:[#allocation2 + $0x38] sm:$0xff]
        %v371 = vld [vmem:[#allocation2 + $0x40] sm:$0xff]
        %v372 = vld [vmem:[#allocation2 + $0x48] sm:$0xff]
        %v373 = vld [vmem:[#allocation2 + $0x50] sm:$0xff]
        %v374 = vld [vmem:[#allocation2 + $0x58] sm:$0xff]
        %v375 = vld [vmem:[#allocation2 + $0x60] sm:$0xff]
        %v376 = vld [vmem:[#allocation2 + $0x68] sm:$0xff]
        %v377 = vld [vmem:[#allocation2 + $0x70] sm:$0xff]
        %v378 = vld [vmem:[#allocation2 + $0x78] sm:$0xff]
        %v379 = vld [vmem:[#allocation2 + $0x80] sm:$0xff]
        %v380 = vld [vmem:[#allocation2 + $0x88] sm:$0xff]
        %v381 = vld [vmem:[#allocation2 + $0x90] sm:$0xff]
        %v382 = vld [vmem:[#allocation2 + $0x98] sm:$0xff]
        %v383 = vld [vmem:[#allocation2 + $0xa0] sm:$0xff]
        %v384 = vld [vmem:[#allocation2 + $0xa8] sm:$0xff]
        %v385 = vld [vmem:[#allocation2 + $0xb0] sm:$0xff]
        %v386 = vld [vmem:[#allocation2 + $0xb8] sm:$0xff]
        %v387 = vld [vmem:[#allocation2 + $0xc0] sm:$0xff]
        %v388 = vld [vmem:[#allocation2 + $0xc8] sm:$0xff]
        %v389 = vld [vmem:[#allocation2 + $0xd0] sm:$0xff]
        %v390 = vld [vmem:[#allocation2 + $0xd8] sm:$0xff]
        %v391 = vld [vmem:[#allocation2 + $0xe0] sm:$0xff]
        %v392 = vld [vmem:[#allocation2 + $0xe8] sm:$0xff]
        %v393 = vld [vmem:[#allocation2 + $0xf0] sm:$0xff]
        %v394 = vld [vmem:[#allocation2 + $0xf8] sm:$0xff]
        %v395 = vld [vmem:[#allocation2 + $0x100] sm:$0xff]
        %v396 = vld [vmem:[#allocation2 + $0x108] sm:$0xff]
        %v397 = vld [vmem:[#allocation2 + $0x110] sm:$0xff]
        %v398 = vld [vmem:[#allocation2 + $0x118] sm:$0xff]
        %v399 = vld [vmem:[#allocation2 + $0x120] sm:$0xff]
        %v400 = vld [vmem:[#allocation2 + $0x128] sm:$0xff]
        %v401 = vld [vmem:[#allocation2 + $0x130] sm:$0xff]
        %v402 = vld [vmem:[#allocation2 + $0x138] sm:$0xff]
        %v403 = vld [vmem:[#allocation2 + $0x140] sm:$0xff]
        %v404 = vld [vmem:[#allocation2 + $0x148] sm:$0xff]
        %v405 = vld [vmem:[#allocation2 + $0x150] sm:$0xff]
        %v406 = vld [vmem:[#allocation2 + $0x158] sm:$0xff]
        %v407 = vld [vmem:[#allocation2 + $0x160] sm:$0xff]
        %v408 = vld [vmem:[#allocation2 + $0x168] sm:$0xff]
        %v409 = vld [vmem:[#allocation2 + $0x170] sm:$0xff]
        %v410 = vld [vmem:[#allocation2 + $0x178] sm:$0xff]
        %v411 = vld [vmem:[#allocation2 + $0x180] sm:$0xff]
        %v412 = vld [vmem:[#allocation2 + $0x188] sm:$0xff]
        %v413 = vld [vmem:[#allocation2 + $0x190] sm:$0xff]
        %v414 = vld [vmem:[#allocation2 + $0x198] sm:$0xff]
        %v415 = vld [vmem:[#allocation2 + $0x1a0] sm:$0xff]
        %v416 = vld [vmem:[#allocation2 + $0x1a8] sm:$0xff]
        %v417 = vld [vmem:[#allocation2 + $0x1b0] sm:$0xff]
        %v418 = vld [vmem:[#allocation2 + $0x1b8] sm:$0xff]
        %v419 = vld [vmem:[#allocation2 + $0x1c0] sm:$0xff]
        %v420 = vld [vmem:[#allocation2 + $0x1c8] sm:$0xff]
        %v421 = vld [vmem:[#allocation2 + $0x1d0] sm:$0xff]
        %v422 = vld [vmem:[#allocation2 + $0x1d8] sm:$0xff]
        %v423 = vld [vmem:[#allocation2 + $0x1e0] sm:$0xff]
        %v424 = vld [vmem:[#allocation2 + $0x1e8] sm:$0xff]
        %v425 = vld [vmem:[#allocation2 + $0x1f0] sm:$0xff]
        %v426 = vld [vmem:[#allocation2 + $0x1f8] sm:$0xff]
        %v427 = vld [vmem:[#allocation2 + $0x200] sm:$0xff]
        %v428 = vld [vmem:[#allocation2 + $0x208] sm:$0xff]
        %v429 = vld [vmem:[#allocation2 + $0x210] sm:$0xff]
        %v430 = vld [vmem:[#allocation2 + $0x218] sm:$0xff]
        %v431 = vld [vmem:[#allocation2 + $0x220] sm:$0xff]
        %v432 = vld [vmem:[#allocation2 + $0x228] sm:$0xff]
        %v433 = vld [vmem:[#allocation2 + $0x230] sm:$0xff]
        %v434 = vld [vmem:[#allocation2 + $0x238] sm:$0xff]
        %v435 = vld [vmem:[#allocation2 + $0x240] sm:$0xff]
        %v436 = vld [vmem:[#allocation2 + $0x248] sm:$0xff]
        %v437 = vld [vmem:[#allocation2 + $0x250] sm:$0xff]
        %v438 = vld [vmem:[#allocation2 + $0x258] sm:$0xff]
        %v439 = vld [vmem:[#allocation2 + $0x260] sm:$0xff]
        %v440 = vld [vmem:[#allocation2 + $0x268] sm:$0xff]
        %v441 = vld [vmem:[#allocation2 + $0x270] sm:$0xff]
        %v442 = vld [vmem:[#allocation2 + $0x278] sm:$0xff]
        %v443 = vld [vmem:[#allocation2 + $0x280] sm:$0xff]
        %v444 = vld [vmem:[#allocation2 + $0x288] sm:$0xff]
        %v445 = vld [vmem:[#allocation2 + $0x290] sm:$0xff]
        %v446 = vld [vmem:[#allocation2 + $0x298] sm:$0xff]
        %v447 = vld [vmem:[#allocation2 + $0x2a0] sm:$0xff]
        %v448 = vld [vmem:[#allocation2 + $0x2a8] sm:$0xff]
        %v449 = vld [vmem:[#allocation2 + $0x2b0] sm:$0xff]
        %v450 = vld [vmem:[#allocation2 + $0x2b8] sm:$0xff]
        %v451 = vld [vmem:[#allocation2 + $0x2c0] sm:$0xff]
        %v452 = vld [vmem:[#allocation2 + $0x2c8] sm:$0xff]
        %v453 = vld [vmem:[#allocation2 + $0x2d0] sm:$0xff]
        %v454 = vld [vmem:[#allocation2 + $0x2d8] sm:$0xff]
        %v455 = vld [vmem:[#allocation2 + $0x2e0] sm:$0xff]
        %v456 = vld [vmem:[#allocation2 + $0x2e8] sm:$0xff]
        %v457 = vld [vmem:[#allocation2 + $0x2f0] sm:$0xff]
        %v458 = vld [vmem:[#allocation2 + $0x2f8] sm:$0xff]
        %v459 = vld [vmem:[#allocation2 + $0x300] sm:$0xff]
        %v460 = vld [vmem:[#allocation2 + $0x308] sm:$0xff]
        %v461 = vld [vmem:[#allocation2 + $0x310] sm:$0xff]
        %v462 = vld [vmem:[#allocation2 + $0x318] sm:$0xff]
        %v463 = vld [vmem:[#allocation2 + $0x320] sm:$0xff]
        %v464 = vld [vmem:[#allocation2 + $0x328] sm:$0xff]
        %v465 = vld [vmem:[#allocation2 + $0x330] sm:$0xff]
        %v466 = vld [vmem:[#allocation2 + $0x338] sm:$0xff]
        %v467 = vld [vmem:[#allocation2 + $0x340] sm:$0xff]
        %v468 = vld [vmem:[#allocation2 + $0x348] sm:$0xff]
        %v469 = vld [vmem:[#allocation2 + $0x350] sm:$0xff]
        %v470 = vld [vmem:[#allocation2 + $0x358] sm:$0xff]
        %v471 = vld [vmem:[#allocation2 + $0x360] sm:$0xff]
        %v472 = vld [vmem:[#allocation2 + $0x368] sm:$0xff]
        %v473 = vld [vmem:[#allocation2 + $0x370] sm:$0xff]
        %v474 = vld [vmem:[#allocation2 + $0x378] sm:$0xff]
        %v475 = vld [vmem:[#allocation2 + $0x380] sm:$0xff]
        %v476 = vld [vmem:[#allocation2 + $0x388] sm:$0xff]
        %v477 = vld [vmem:[#allocation2 + $0x390] sm:$0xff]
        %v478 = vld [vmem:[#allocation2 + $0x398] sm:$0xff]
        %v479 = vld [vmem:[#allocation2 + $0x3a0] sm:$0xff]
        %v480 = vld [vmem:[#allocation2 + $0x3a8] sm:$0xff]
        %v481 = vld [vmem:[#allocation2 + $0x3b0] sm:$0xff]
        %v482 = vld [vmem:[#allocation2 + $0x3b8] sm:$0xff]
        %v483 = vld [vmem:[#allocation2 + $0x3c0] sm:$0xff]
        %v484 = vld [vmem:[#allocation2 + $0x3c8] sm:$0xff]
        %v485 = vld [vmem:[#allocation2 + $0x3d0] sm:$0xff]
        %v486 = vld [vmem:[#allocation2 + $0x3d8] sm:$0xff]
        %v487 = vld [vmem:[#allocation2 + $0x3e0] sm:$0xff]
        %v488 = vld [vmem:[#allocation2 + $0x3e8] sm:$0xff]
        %v489 = vld [vmem:[#allocation2 + $0x3f0] sm:$0xff]
        %v490 = vld [vmem:[#allocation2 + $0x3f8] sm:$0xff]
        %v491 = vld [vmem:[#allocation2 + $0x400] sm:$0xff]
        %v492 = vld [vmem:[#allocation2 + $0x408] sm:$0xff]
        %v493 = vld [vmem:[#allocation2 + $0x410] sm:$0xff]
        %v494 = vld [vmem:[#allocation2 + $0x418] sm:$0xff]
        %v495 = vld [vmem:[#allocation2 + $0x420] sm:$0xff]
        %v496 = vld [vmem:[#allocation2 + $0x428] sm:$0xff]
        %v497 = vld [vmem:[#allocation2 + $0x430] sm:$0xff]
        %v498 = vld [vmem:[#allocation2 + $0x438] sm:$0xff]
        %v499 = vld [vmem:[#allocation2 + $0x440] sm:$0xff]
        %v500 = vld [vmem:[#allocation2 + $0x448] sm:$0xff]
        %v501 = vld [vmem:[#allocation2 + $0x450] sm:$0xff]
        %v502 = vld [vmem:[#allocation2 + $0x458] sm:$0xff]
        %v503 = vld [vmem:[#allocation2 + $0x460] sm:$0xff]
        %v504 = vld [vmem:[#allocation2 + $0x468] sm:$0xff]
        %v505 = vld [vmem:[#allocation2 + $0x470] sm:$0xff]
        %v506 = vld [vmem:[#allocation2 + $0x478] sm:$0xff]
        %v507 = vld [vmem:[#allocation2 + $0x480] sm:$0xff]
        %v508 = vld [vmem:[#allocation2 + $0x488] sm:$0xff]
        %v509 = vld [vmem:[#allocation2 + $0x490] sm:$0xff]
        %v510 = vld [vmem:[#allocation2 + $0x498] sm:$0xff]
        %v511 = vld [vmem:[#allocation2 + $0x4a0] sm:$0xff]
        %v512 = vld [vmem:[#allocation2 + $0x4a8] sm:$0xff]
        %v513 = vld [vmem:[#allocation2 + $0x4b0] sm:$0xff]
        %v514 = vld [vmem:[#allocation2 + $0x4b8] sm:$0xff]
        %v515 = vld [vmem:[#allocation2 + $0x4c0] sm:$0xff]
        %v516 = vld [vmem:[#allocation2 + $0x4c8] sm:$0xff]
        %v517 = vld [vmem:[#allocation2 + $0x4d0] sm:$0xff]
        %v518 = vld [vmem:[#allocation2 + $0x4d8] sm:$0xff]
        %v519 = vld [vmem:[#allocation2 + $0x4e0] sm:$0xff]
        %v520 = vld [vmem:[#allocation2 + $0x4e8] sm:$0xff]
        %v521 = vld [vmem:[#allocation2 + $0x4f0] sm:$0xff]
        %v522 = vld [vmem:[#allocation2 + $0x4f8] sm:$0xff]
        %v523 = vld [vmem:[#allocation2 + $0x500] sm:$0xff]
        %v524 = vld [vmem:[#allocation2 + $0x508] sm:$0xff]
        %v525 = vld [vmem:[#allocation2 + $0x510] sm:$0xff]
        %v526 = vld [vmem:[#allocation2 + $0x518] sm:$0xff]
        %v527 = vld [vmem:[#allocation2 + $0x520] sm:$0xff]
        %v528 = vld [vmem:[#allocation2 + $0x528] sm:$0xff]
        %v529 = vld [vmem:[#allocation2 + $0x530] sm:$0xff]
        %v530 = vld [vmem:[#allocation2 + $0x538] sm:$0xff]
        %v531 = vld [vmem:[#allocation2 + $0x540] sm:$0xff]
        %v532 = vld [vmem:[#allocation2 + $0x548] sm:$0xff]
        %v533 = vld [vmem:[#allocation2 + $0x550] sm:$0xff]
        %v534 = vld [vmem:[#allocation2 + $0x558] sm:$0xff]
        %v535 = vld [vmem:[#allocation2 + $0x560] sm:$0xff]
        %v536 = vld [vmem:[#allocation2 + $0x568] sm:$0xff]
        %v537 = vld [vmem:[#allocation2 + $0x570] sm:$0xff]
        %v538 = vld [vmem:[#allocation2 + $0x578] sm:$0xff]
        %v539 = vld [vmem:[#allocation2 + $0x580] sm:$0xff]
        %v540 = vld [vmem:[#allocation2 + $0x588] sm:$0xff]
        %v541 = vld [vmem:[#allocation2 + $0x590] sm:$0xff]
        %v542 = vld [vmem:[#allocation2 + $0x598] sm:$0xff]
        %v543 = vld [vmem:[#allocation2 + $0x5a0] sm:$0xff]
        %v544 = vld [vmem:[#allocation2 + $0x5a8] sm:$0xff]
        %v545 = vld [vmem:[#allocation2 + $0x5b0] sm:$0xff]
        %v546 = vld [vmem:[#allocation2 + $0x5b8] sm:$0xff]
        %v547 = vld [vmem:[#allocation2 + $0x5c0] sm:$0xff]
        %v548 = vld [vmem:[#allocation2 + $0x5c8] sm:$0xff]
        %v549 = vld [vmem:[#allocation2 + $0x5d0] sm:$0xff]
        %v550 = vld [vmem:[#allocation2 + $0x5d8] sm:$0xff]
        %v551 = vld [vmem:[#allocation2 + $0x5e0] sm:$0xff]
        %v552 = vld [vmem:[#allocation2 + $0x5e8] sm:$0xff]
        %v553 = vld [vmem:[#allocation2 + $0x5f0] sm:$0xff]
        %v554 = vld [vmem:[#allocation2 + $0x5f8] sm:$0xff]
        %v555 = vld [vmem:[#allocation2 + $0x600] sm:$0xff]
        %v556 = vld [vmem:[#allocation2 + $0x608] sm:$0xff]
        %v557 = vld [vmem:[#allocation2 + $0x610] sm:$0xff]
        %v558 = vld [vmem:[#allocation2 + $0x618] sm:$0xff]
        %v559 = vld [vmem:[#allocation2 + $0x620] sm:$0xff]
        %v560 = vld [vmem:[#allocation2 + $0x628] sm:$0xff]
        %v561 = vld [vmem:[#allocation2 + $0x630] sm:$0xff]
        %v562 = vld [vmem:[#allocation2 + $0x638] sm:$0xff]
        %v563 = vld [vmem:[#allocation2 + $0x640] sm:$0xff]
        %v564 = vld [vmem:[#allocation2 + $0x648] sm:$0xff]
        %v565 = vld [vmem:[#allocation2 + $0x650] sm:$0xff]
        %v566 = vld [vmem:[#allocation2 + $0x658] sm:$0xff]
        %v567 = vld [vmem:[#allocation2 + $0x660] sm:$0xff]
        %v568 = vld [vmem:[#allocation2 + $0x668] sm:$0xff]
        %v569 = vld [vmem:[#allocation2 + $0x670] sm:$0xff]
        %v570 = vld [vmem:[#allocation2 + $0x678] sm:$0xff]
        %v571 = vld [vmem:[#allocation2 + $0x680] sm:$0xff]
        %v572 = vld [vmem:[#allocation2 + $0x688] sm:$0xff]
        %v573 = vld [vmem:[#allocation2 + $0x690] sm:$0xff]
        %v574 = vld [vmem:[#allocation2 + $0x698] sm:$0xff]
        %v575 = vld [vmem:[#allocation2 + $0x6a0] sm:$0xff]
        %v576 = vld [vmem:[#allocation2 + $0x6a8] sm:$0xff]
        %v577 = vld [vmem:[#allocation2 + $0x6b0] sm:$0xff]
        %v578 = vld [vmem:[#allocation2 + $0x6b8] sm:$0xff]
        %v579 = vld [vmem:[#allocation2 + $0x6c0] sm:$0xff]
        %v580 = vld [vmem:[#allocation2 + $0x6c8] sm:$0xff]
        %v581 = vld [vmem:[#allocation2 + $0x6d0] sm:$0xff]
        %v582 = vld [vmem:[#allocation2 + $0x6d8] sm:$0xff]
        %v583 = vld [vmem:[#allocation2 + $0x6e0] sm:$0xff]
        %v584 = vld [vmem:[#allocation2 + $0x6e8] sm:$0xff]
        %v585 = vld [vmem:[#allocation2 + $0x6f0] sm:$0xff]
        %v586 = vld [vmem:[#allocation2 + $0x6f8] sm:$0xff]
        %v587 = vld [vmem:[#allocation2 + $0x700] sm:$0xff]
        %v588 = vld [vmem:[#allocation2 + $0x708] sm:$0xff]
        %v589 = vld [vmem:[#allocation2 + $0x710] sm:$0xff]
        %v590 = vld [vmem:[#allocation2 + $0x718] sm:$0xff]
        %v591 = vld [vmem:[#allocation2 + $0x720] sm:$0xff]
        %v592 = vld [vmem:[#allocation2 + $0x728] sm:$0xff]
        %v593 = vld [vmem:[#allocation2 + $0x730] sm:$0xff]
        %v594 = vld [vmem:[#allocation2 + $0x738] sm:$0xff]
        %v595 = vld [vmem:[#allocation2 + $0x740] sm:$0xff]
        %v596 = vld [vmem:[#allocation2 + $0x748] sm:$0xff]
        %v597 = vld [vmem:[#allocation2 + $0x750] sm:$0xff]
        %v598 = vld [vmem:[#allocation2 + $0x758] sm:$0xff]
        %v599 = vld [vmem:[#allocation2 + $0x760] sm:$0xff]
        %v600 = vld [vmem:[#allocation2 + $0x768] sm:$0xff]
        %v601 = vld [vmem:[#allocation2 + $0x770] sm:$0xff]
        %v602 = vld [vmem:[#allocation2 + $0x778] sm:$0xff]
        %v603 = vld [vmem:[#allocation2 + $0x780] sm:$0xff]
        %v604 = vld [vmem:[#allocation2 + $0x788] sm:$0xff]
        %v605 = vld [vmem:[#allocation2 + $0x790] sm:$0xff]
        %v606 = vld [vmem:[#allocation2 + $0x798] sm:$0xff]
        %v607 = vld [vmem:[#allocation2 + $0x7a0] sm:$0xff]
        %v608 = vld [vmem:[#allocation2 + $0x7a8] sm:$0xff]
        %v609 = vld [vmem:[#allocation2 + $0x7b0] sm:$0xff]
        %v610 = vld [vmem:[#allocation2 + $0x7b8] sm:$0xff]
        %v611 = vld [vmem:[#allocation2 + $0x7c0] sm:$0xff]
        %v612 = vld [vmem:[#allocation2 + $0x7c8] sm:$0xff]
        %v613 = vld [vmem:[#allocation2 + $0x7d0] sm:$0xff]
        %v614 = vld [vmem:[#allocation2 + $0x7d8] sm:$0xff]
        %v615 = vld [vmem:[#allocation2 + $0x7e0] sm:$0xff]
        %v616 = vld [vmem:[#allocation2 + $0x7e8] sm:$0xff]
        %v617 = vld [vmem:[#allocation2 + $0x7f0] sm:$0xff]
        %v618 = vld [vmem:[#allocation2 + $0x7f8] sm:$0xff]
        %v619 = vld [vmem:[#allocation2 + $0x800] sm:$0xff]
        %v620 = vld [vmem:[#allocation2 + $0x808] sm:$0xff]
        %v621 = vld [vmem:[#allocation2 + $0x810] sm:$0xff]
        %v622 = vld [vmem:[#allocation2 + $0x818] sm:$0xff]
        %v623 = vld [vmem:[#allocation2 + $0x820] sm:$0xff]
        %v624 = vld [vmem:[#allocation2 + $0x828] sm:$0xff]
        %v625 = vld [vmem:[#allocation2 + $0x830] sm:$0xff]
        %v626 = vld [vmem:[#allocation2 + $0x838] sm:$0xff]
        %v627 = vld [vmem:[#allocation2 + $0x840] sm:$0xff]
        %v628 = vld [vmem:[#allocation2 + $0x848] sm:$0xff]
        %v629 = vld [vmem:[#allocation2 + $0x850] sm:$0xff]
        %v630 = vld [vmem:[#allocation2 + $0x858] sm:$0xff]
        %v631 = vld [vmem:[#allocation2 + $0x860] sm:$0xff]
        %v632 = vld [vmem:[#allocation2 + $0x868] sm:$0xff]
        %v633 = vld [vmem:[#allocation2 + $0x870] sm:$0xff]
        %v634 = vld [vmem:[#allocation2 + $0x878] sm:$0xff]
        %v635 = vld [vmem:[#allocation2 + $0x880] sm:$0xff]
        %v636 = vld [vmem:[#allocation2 + $0x888] sm:$0xff]
        %v637 = vld [vmem:[#allocation2 + $0x890] sm:$0xff]
        %v638 = vld [vmem:[#allocation2 + $0x898] sm:$0xff]
        %v639 = vld [vmem:[#allocation2 + $0x8a0] sm:$0xff]
        %v640 = vld [vmem:[#allocation2 + $0x8a8] sm:$0xff]
        %v641 = vld [vmem:[#allocation2 + $0x8b0] sm:$0xff]
        %v642 = vld [vmem:[#allocation2 + $0x8b8] sm:$0xff]
        %v643 = vld [vmem:[#allocation2 + $0x8c0] sm:$0xff]
        %v644 = vld [vmem:[#allocation2 + $0x8c8] sm:$0xff]
        %v645 = vld [vmem:[#allocation2 + $0x8d0] sm:$0xff]
        %v646 = vld [vmem:[#allocation2 + $0x8d8] sm:$0xff]
        %v647 = vld [vmem:[#allocation2 + $0x8e0] sm:$0xff]
        %v648 = vld [vmem:[#allocation2 + $0x8e8] sm:$0xff]
        %v649 = vld [vmem:[#allocation2 + $0x8f0] sm:$0xff]
        %v650 = vld [vmem:[#allocation2 + $0x8f8] sm:$0xff]
        %v651 = vld [vmem:[#allocation2 + $0x900] sm:$0xff]
        %v652 = vld [vmem:[#allocation2 + $0x908] sm:$0xff]
        %v653 = vld [vmem:[#allocation2 + $0x910] sm:$0xff]
        %v654 = vld [vmem:[#allocation2 + $0x918] sm:$0xff]
        %v655 = vld [vmem:[#allocation2 + $0x920] sm:$0xff]
        %v656 = vld [vmem:[#allocation2 + $0x928] sm:$0xff]
        %v657 = vld [vmem:[#allocation2 + $0x930] sm:$0xff]
        %v658 = vld [vmem:[#allocation2 + $0x938] sm:$0xff]
        %v659 = vld [vmem:[#allocation2 + $0x940] sm:$0xff]
        %v660 = vld [vmem:[#allocation2 + $0x948] sm:$0xff]
        %v661 = vld [vmem:[#allocation2 + $0x950] sm:$0xff]
        %v662 = vld [vmem:[#allocation2 + $0x958] sm:$0xff]
        %v663 = vld [vmem:[#allocation2 + $0x960] sm:$0xff]
        %v664 = vld [vmem:[#allocation2 + $0x968] sm:$0xff]
        %v665 = vld [vmem:[#allocation2 + $0x970] sm:$0xff]
        %v666 = vld [vmem:[#allocation2 + $0x978] sm:$0xff]
        %v667 = vld [vmem:[#allocation2 + $0x980] sm:$0xff]
        %v668 = vld [vmem:[#allocation2 + $0x988] sm:$0xff]
        %v669 = vld [vmem:[#allocation2 + $0x990] sm:$0xff]
        %v670 = vld [vmem:[#allocation2 + $0x998] sm:$0xff]
        %v671 = vld [vmem:[#allocation2 + $0x9a0] sm:$0xff]
        %v672 = vld [vmem:[#allocation2 + $0x9a8] sm:$0xff]
        %v673 = vld [vmem:[#allocation2 + $0x9b0] sm:$0xff]
        %v674 = vld [vmem:[#allocation2 + $0x9b8] sm:$0xff]
        %v675 = vld [vmem:[#allocation2 + $0x9c0] sm:$0xff]
        %v676 = vld [vmem:[#allocation2 + $0x9c8] sm:$0xff]
        %v677 = vld [vmem:[#allocation2 + $0x9d0] sm:$0xff]
        %v678 = vld [vmem:[#allocation2 + $0x9d8] sm:$0xff]
        %v679 = vld [vmem:[#allocation2 + $0x9e0] sm:$0xff]
        %v680 = vld [vmem:[#allocation2 + $0x9e8] sm:$0xff]
        %v681 = vld [vmem:[#allocation2 + $0x9f0] sm:$0xff]
        %v682 = vld [vmem:[#allocation2 + $0x9f8] sm:$0xff]
        %v683 = vld [vmem:[#allocation2 + $0xa00] sm:$0xff]
        %v684 = vld [vmem:[#allocation2 + $0xa08] sm:$0xff]
        %v685 = vld [vmem:[#allocation2 + $0xa10] sm:$0xff]
        %v686 = vld [vmem:[#allocation2 + $0xa18] sm:$0xff]
        %v687 = vld [vmem:[#allocation2 + $0xa20] sm:$0xff]
        %v688 = vld [vmem:[#allocation2 + $0xa28] sm:$0xff]
        %v689 = vld [vmem:[#allocation2 + $0xa30] sm:$0xff]
        %v690 = vld [vmem:[#allocation2 + $0xa38] sm:$0xff]
        %v691 = vld [vmem:[#allocation2 + $0xa40] sm:$0xff]
        %v692 = vld [vmem:[#allocation2 + $0xa48] sm:$0xff]
        %v693 = vld [vmem:[#allocation2 + $0xa50] sm:$0xff]
        %v694 = vld [vmem:[#allocation2 + $0xa58] sm:$0xff]
        %v695 = vld [vmem:[#allocation2 + $0xa60] sm:$0xff]
        %v696 = vld [vmem:[#allocation2 + $0xa68] sm:$0xff]
        %v697 = vld [vmem:[#allocation2 + $0xa70] sm:$0xff]
        %v698 = vld [vmem:[#allocation2 + $0xa78] sm:$0xff]
        %v699 = vld [vmem:[#allocation2 + $0xa80] sm:$0xff]
        %v700 = vld [vmem:[#allocation2 + $0xa88] sm:$0xff]
        %v701 = vld [vmem:[#allocation2 + $0xa90] sm:$0xff]
        %v702 = vld [vmem:[#allocation2 + $0xa98] sm:$0xff]
        %v703 = vld [vmem:[#allocation2 + $0xaa0] sm:$0xff]
        %v704 = vld [vmem:[#allocation2 + $0xaa8] sm:$0xff]
        %v705 = vld [vmem:[#allocation2 + $0xab0] sm:$0xff]
        %v706 = vld [vmem:[#allocation2 + $0xab8] sm:$0xff]
        %v707 = vld [vmem:[#allocation2 + $0xac0] sm:$0xff]
        %v708 = vld [vmem:[#allocation2 + $0xac8] sm:$0xff]
        %v709 = vld [vmem:[#allocation2 + $0xad0] sm:$0xff]
        %v710 = vld [vmem:[#allocation2 + $0xad8] sm:$0xff]
        %v711 = vld [vmem:[#allocation2 + $0xae0] sm:$0xff]
        %v712 = vld [vmem:[#allocation2 + $0xae8] sm:$0xff]
        %v713 = vld [vmem:[#allocation2 + $0xaf0] sm:$0xff]
        %v714 = vld [vmem:[#allocation2 + $0xaf8] sm:$0xff]
        %715 = vmatprep.subr.mxu0 %v529
        %716 = vmatpush1.msra.mxu0 %v528
        %717 = vmatprep.subr.mxu0 %v518
        %718 = vmatpush1.msra.mxu0 %v517
        %719 = vmatprep.subr.mxu0 %v507
        %720 = vmatpush1.msra.mxu0 %v506
        %721 = vmatprep.subr.mxu0 %v496
        %722 = vmatpush1.msra.mxu0 %v495
        %723 = vmatprep.subr.mxu0 %v485
        %724 = vmatpush1.msra.mxu0 %v484
        %725 = vmatprep.subr.mxu0 %v474
        %726 = vmatpush1.msra.mxu0 %v473
        %727 = vmatprep.subr.mxu0 %v463
        %728 = vmatpush1.msra.mxu0 %v462
        %729 = vmatprep.subr.mxu0 %v452
        %730 = vmatpush1.msra.mxu0 %v451
        %731 = vmatprep.subr.mxu0 %v441
        %732 = vmatpush1.msra.mxu0 %v440
        %733 = vmatprep.subr.mxu0 %v430
        %734 = vmatpush1.msra.mxu0 %v429
        %735 = vmatprep.subr.mxu0 %v419
        %736 = vmatpush1.msra.mxu0 %v418
        %737 = vmatprep.subr.mxu0 %v408
        %738 = vmatpush1.msra.mxu0 %v407
        %739 = vmatprep.subr.mxu0 %v397
        %740 = vmatpush1.msra.mxu0 %v396
        %741 = vmatprep.subr.mxu0 %v386
        %742 = vmatpush1.msra.mxu0 %v385
        %743 = vmatprep.subr.mxu0 %v375
        %744 = vmatpush1.msra.mxu0 %v374
        %745 = vmatprep.subr.mxu0 %v364
        %746 = vmatpush1.msra.mxu0 %v363
        %747 = vmatprep.subr.mxu0 %v705
        %748 = vmatpush2.msra.mxu0 %v704
        %749 = vmatprep.subr.mxu0 %v694
        %750 = vmatpush2.msra.mxu0 %v693
        %751 = vmatprep.subr.mxu0 %v683
        %752 = vmatpush2.msra.mxu0 %v682
        %753 = vmatprep.subr.mxu0 %v672
        %754 = vmatpush2.msra.mxu0 %v671
        %755 = vmatprep.subr.mxu0 %v661
        %756 = vmatpush2.msra.mxu0 %v660
        %757 = vmatprep.subr.mxu0 %v650
        %758 = vmatpush2.msra.mxu0 %v649
        %759 = vmatprep.subr.mxu0 %v639
        %760 = vmatpush2.msra.mxu0 %v638
        %761 = vmatprep.subr.mxu0 %v628
        %762 = vmatpush2.msra.mxu0 %v627
        %763 = vmatprep.subr.mxu0 %v617
        %764 = vmatpush2.msra.mxu0 %v616
        %765 = vmatprep.subr.mxu0 %v606
        %766 = vmatpush2.msra.mxu0 %v605
        %767 = vmatprep.subr.mxu0 %v595
        %768 = vmatpush2.msra.mxu0 %v594
        %769 = vmatprep.subr.mxu0 %v584
        %770 = vmatpush2.msra.mxu0 %v583
        %771 = vmatprep.subr.mxu0 %v573
        %772 = vmatpush2.msra.mxu0 %v572
        %773 = vmatprep.subr.mxu0 %v562
        %774 = vmatpush2.msra.mxu0 %v561
        %775 = vmatprep.subr.mxu0 %v551
        %776 = vmatpush2.msra.mxu0 %v550
        %777 = vmatprep.subr.mxu0 %v540
        %778 = vmatpush2.msra.mxu0 %v539
        %779 = vmatprep.mubr.f32.mxu0 %v362
        %780 = vmatmul.mubr.f32.gmra.mxu0 %v361
        %v781 = vpop.f32.mrf.mxu0
        %v782 = vadd.f32 0.0, %v781
        %v783 = vpop.f32.mrf.mxu0
        %v784 = vadd.f32 0.0, %v783
        %785 = vdwg.mxu0
        %786 = vmatprep.subr.mxu0 %v531
        %787 = vmatpush1.msra.mxu0 %v530
        %788 = vmatprep.subr.mxu0 %v520
        %789 = vmatpush1.msra.mxu0 %v519
        %790 = vmatprep.subr.mxu0 %v509
        %791 = vmatpush1.msra.mxu0 %v508
        %792 = vmatprep.subr.mxu0 %v498
        %793 = vmatpush1.msra.mxu0 %v497
        %794 = vmatprep.subr.mxu0 %v487
        %795 = vmatpush1.msra.mxu0 %v486
        %796 = vmatprep.subr.mxu0 %v476
        %797 = vmatpush1.msra.mxu0 %v475
        %798 = vmatprep.subr.mxu0 %v465
        %799 = vmatpush1.msra.mxu0 %v464
        %800 = vmatprep.subr.mxu0 %v454
        %801 = vmatpush1.msra.mxu0 %v453
        %802 = vmatprep.subr.mxu0 %v443
        %803 = vmatpush1.msra.mxu0 %v442
        %804 = vmatprep.subr.mxu0 %v432
        %805 = vmatpush1.msra.mxu0 %v431
        %806 = vmatprep.subr.mxu0 %v421
        %807 = vmatpush1.msra.mxu0 %v420
        %808 = vmatprep.subr.mxu0 %v410
        %809 = vmatpush1.msra.mxu0 %v409
        %810 = vmatprep.subr.mxu0 %v399
        %811 = vmatpush1.msra.mxu0 %v398
        %812 = vmatprep.subr.mxu0 %v388
        %813 = vmatpush1.msra.mxu0 %v387
        %814 = vmatprep.subr.mxu0 %v377
        %815 = vmatpush1.msra.mxu0 %v376
        %816 = vmatprep.subr.mxu0 %v366
        %817 = vmatpush1.msra.mxu0 %v365
        %818 = vmatprep.subr.mxu0 %v707
        %819 = vmatpush2.msra.mxu0 %v706
        %820 = vmatprep.subr.mxu0 %v696
        %821 = vmatpush2.msra.mxu0 %v695
        %822 = vmatprep.subr.mxu0 %v685
        %823 = vmatpush2.msra.mxu0 %v684
        %824 = vmatprep.subr.mxu0 %v674
        %825 = vmatpush2.msra.mxu0 %v673
        %826 = vmatprep.subr.mxu0 %v663
        %827 = vmatpush2.msra.mxu0 %v662
        %828 = vmatprep.subr.mxu0 %v652
        %829 = vmatpush2.msra.mxu0 %v651
        %830 = vmatprep.subr.mxu0 %v641
        %831 = vmatpush2.msra.mxu0 %v640
        %832 = vmatprep.subr.mxu0 %v630
        %833 = vmatpush2.msra.mxu0 %v629
        %834 = vmatprep.subr.mxu0 %v619
        %835 = vmatpush2.msra.mxu0 %v618
        %836 = vmatprep.subr.mxu0 %v608
        %837 = vmatpush2.msra.mxu0 %v607
        %838 = vmatprep.subr.mxu0 %v597
        %839 = vmatpush2.msra.mxu0 %v596
        %840 = vmatprep.subr.mxu0 %v586
        %841 = vmatpush2.msra.mxu0 %v585
        %842 = vmatprep.subr.mxu0 %v575
        %843 = vmatpush2.msra.mxu0 %v574
        %844 = vmatprep.subr.mxu0 %v564
        %845 = vmatpush2.msra.mxu0 %v563
        %846 = vmatprep.subr.mxu0 %v553
        %847 = vmatpush2.msra.mxu0 %v552
        %848 = vmatprep.subr.mxu0 %v542
        %849 = vmatpush2.msra.mxu0 %v541
        %850 = vmatprep.mubr.f32.mxu0 %v362
        %851 = vmatmul.mubr.f32.gmra.mxu0 %v361
        %v852 = vpop.f32.mrf.mxu0
        %v853 = vadd.f32 0.0, %v852
        %v854 = vpop.f32.mrf.mxu0
        %v855 = vadd.f32 0.0, %v854
        %856 = vdwg.mxu0
        %857 = vmatprep.subr.mxu0 %v533
        %858 = vmatpush1.msra.mxu0 %v532
        %859 = vmatprep.subr.mxu0 %v522
        %860 = vmatpush1.msra.mxu0 %v521
        %861 = vmatprep.subr.mxu0 %v511
        %862 = vmatpush1.msra.mxu0 %v510
        %863 = vmatprep.subr.mxu0 %v500
        %864 = vmatpush1.msra.mxu0 %v499
        %865 = vmatprep.subr.mxu0 %v489
        %866 = vmatpush1.msra.mxu0 %v488
        %867 = vmatprep.subr.mxu0 %v478
        %868 = vmatpush1.msra.mxu0 %v477
        %869 = vmatprep.subr.mxu0 %v467
        %870 = vmatpush1.msra.mxu0 %v466
        %871 = vmatprep.subr.mxu0 %v456
        %872 = vmatpush1.msra.mxu0 %v455
        %873 = vmatprep.subr.mxu0 %v445
        %874 = vmatpush1.msra.mxu0 %v444
        %875 = vmatprep.subr.mxu0 %v434
        %876 = vmatpush1.msra.mxu0 %v433
        %877 = vmatprep.subr.mxu0 %v423
        %878 = vmatpush1.msra.mxu0 %v422
        %879 = vmatprep.subr.mxu0 %v412
        %880 = vmatpush1.msra.mxu0 %v411
        %881 = vmatprep.subr.mxu0 %v401
        %882 = vmatpush1.msra.mxu0 %v400
        %883 = vmatprep.subr.mxu0 %v390
        %884 = vmatpush1.msra.mxu0 %v389
        %885 = vmatprep.subr.mxu0 %v379
        %886 = vmatpush1.msra.mxu0 %v378
        %887 = vmatprep.subr.mxu0 %v368
        %888 = vmatpush1.msra.mxu0 %v367
        %889 = vmatprep.subr.mxu0 %v709
        %890 = vmatpush2.msra.mxu0 %v708
        %891 = vmatprep.subr.mxu0 %v698
        %892 = vmatpush2.msra.mxu0 %v697
        %893 = vmatprep.subr.mxu0 %v687
        %894 = vmatpush2.msra.mxu0 %v686
        %895 = vmatprep.subr.mxu0 %v676
        %896 = vmatpush2.msra.mxu0 %v675
        %897 = vmatprep.subr.mxu0 %v665
        %898 = vmatpush2.msra.mxu0 %v664
        %899 = vmatprep.subr.mxu0 %v654
        %900 = vmatpush2.msra.mxu0 %v653
        %901 = vmatprep.subr.mxu0 %v643
        %902 = vmatpush2.msra.mxu0 %v642
        %903 = vmatprep.subr.mxu0 %v632
        %904 = vmatpush2.msra.mxu0 %v631
        %905 = vmatprep.subr.mxu0 %v621
        %906 = vmatpush2.msra.mxu0 %v620
        %907 = vmatprep.subr.mxu0 %v610
        %908 = vmatpush2.msra.mxu0 %v609
        %909 = vmatprep.subr.mxu0 %v599
        %910 = vmatpush2.msra.mxu0 %v598
        %911 = vmatprep.subr.mxu0 %v588
        %912 = vmatpush2.msra.mxu0 %v587
        %913 = vmatprep.subr.mxu0 %v577
        %914 = vmatpush2.msra.mxu0 %v576
        %915 = vmatprep.subr.mxu0 %v566
        %916 = vmatpush2.msra.mxu0 %v565
        %917 = vmatprep.subr.mxu0 %v555
        %918 = vmatpush2.msra.mxu0 %v554
        %919 = vmatprep.subr.mxu0 %v544
        %920 = vmatpush2.msra.mxu0 %v543
        %921 = vmatprep.mubr.f32.mxu0 %v362
        %922 = vmatmul.mubr.f32.gmra.mxu0 %v361
        %v923 = vpop.f32.mrf.mxu0
        %v924 = vadd.f32 0.0, %v923
        %v925 = vpop.f32.mrf.mxu0
        %v926 = vadd.f32 0.0, %v925
        %927 = vdwg.mxu0
        %928 = vmatprep.subr.mxu0 %v535
        %929 = vmatpush1.msra.mxu0 %v534
        %930 = vmatprep.subr.mxu0 %v524
        %931 = vmatpush1.msra.mxu0 %v523
        %932 = vmatprep.subr.mxu0 %v513
        %933 = vmatpush1.msra.mxu0 %v512
        %934 = vmatprep.subr.mxu0 %v502
        %935 = vmatpush1.msra.mxu0 %v501
        %936 = vmatprep.subr.mxu0 %v491
        %937 = vmatpush1.msra.mxu0 %v490
        %938 = vmatprep.subr.mxu0 %v480
        %939 = vmatpush1.msra.mxu0 %v479
        %940 = vmatprep.subr.mxu0 %v469
        %941 = vmatpush1.msra.mxu0 %v468
        %942 = vmatprep.subr.mxu0 %v458
        %943 = vmatpush1.msra.mxu0 %v457
        %944 = vmatprep.subr.mxu0 %v447
        %945 = vmatpush1.msra.mxu0 %v446
        %946 = vmatprep.subr.mxu0 %v436
        %947 = vmatpush1.msra.mxu0 %v435
        %948 = vmatprep.subr.mxu0 %v425
        %949 = vmatpush1.msra.mxu0 %v424
        %950 = vmatprep.subr.mxu0 %v414
        %951 = vmatpush1.msra.mxu0 %v413
        %952 = vmatprep.subr.mxu0 %v403
        %953 = vmatpush1.msra.mxu0 %v402
        %954 = vmatprep.subr.mxu0 %v392
        %955 = vmatpush1.msra.mxu0 %v391
        %956 = vmatprep.subr.mxu0 %v381
        %957 = vmatpush1.msra.mxu0 %v380
        %958 = vmatprep.subr.mxu0 %v370
        %959 = vmatpush1.msra.mxu0 %v369
        %960 = vmatprep.subr.mxu0 %v711
        %961 = vmatpush2.msra.mxu0 %v710
        %962 = vmatprep.subr.mxu0 %v700
        %963 = vmatpush2.msra.mxu0 %v699
        %964 = vmatprep.subr.mxu0 %v689
        %965 = vmatpush2.msra.mxu0 %v688
        %966 = vmatprep.subr.mxu0 %v678
        %967 = vmatpush2.msra.mxu0 %v677
        %968 = vmatprep.subr.mxu0 %v667
        %969 = vmatpush2.msra.mxu0 %v666
        %970 = vmatprep.subr.mxu0 %v656
        %971 = vmatpush2.msra.mxu0 %v655
        %972 = vmatprep.subr.mxu0 %v645
        %973 = vmatpush2.msra.mxu0 %v644
        %974 = vmatprep.subr.mxu0 %v634
        %975 = vmatpush2.msra.mxu0 %v633
        %976 = vmatprep.subr.mxu0 %v623
        %977 = vmatpush2.msra.mxu0 %v622
        %978 = vmatprep.subr.mxu0 %v612
        %979 = vmatpush2.msra.mxu0 %v611
        %980 = vmatprep.subr.mxu0 %v601
        %981 = vmatpush2.msra.mxu0 %v600
        %982 = vmatprep.subr.mxu0 %v590
        %983 = vmatpush2.msra.mxu0 %v589
        %984 = vmatprep.subr.mxu0 %v579
        %985 = vmatpush2.msra.mxu0 %v578
        %986 = vmatprep.subr.mxu0 %v568
        %987 = vmatpush2.msra.mxu0 %v567
        %988 = vmatprep.subr.mxu0 %v557
        %989 = vmatpush2.msra.mxu0 %v556
        %990 = vmatprep.subr.mxu0 %v546
        %991 = vmatpush2.msra.mxu0 %v545
        %992 = vmatprep.mubr.f32.mxu0 %v362
        %993 = vmatmul.mubr.f32.gmra.mxu0 %v361
        %v994 = vpop.f32.mrf.mxu0
        %v995 = vadd.f32 0.0, %v994
        %v996 = vpop.f32.mrf.mxu0
        %v997 = vadd.f32 0.0, %v996
        %998 = vdwg.mxu0
        %999 = vmatprep.subr.mxu0 %v537
        %1000 = vmatpush1.msra.mxu0 %v536
        %1001 = vmatprep.subr.mxu0 %v526
        %1002 = vmatpush1.msra.mxu0 %v525
        %1003 = vmatprep.subr.mxu0 %v515
        %1004 = vmatpush1.msra.mxu0 %v514
        %1005 = vmatprep.subr.mxu0 %v504
        %1006 = vmatpush1.msra.mxu0 %v503
        %1007 = vmatprep.subr.mxu0 %v493
        %1008 = vmatpush1.msra.mxu0 %v492
        %1009 = vmatprep.subr.mxu0 %v482
        %1010 = vmatpush1.msra.mxu0 %v481
        %1011 = vmatprep.subr.mxu0 %v471
        %1012 = vmatpush1.msra.mxu0 %v470
        %1013 = vmatprep.subr.mxu0 %v460
        %1014 = vmatpush1.msra.mxu0 %v459
        %1015 = vmatprep.subr.mxu0 %v449
        %1016 = vmatpush1.msra.mxu0 %v448
        %1017 = vmatprep.subr.mxu0 %v438
        %1018 = vmatpush1.msra.mxu0 %v437
        %1019 = vmatprep.subr.mxu0 %v427
        %1020 = vmatpush1.msra.mxu0 %v426
        %1021 = vmatprep.subr.mxu0 %v416
        %1022 = vmatpush1.msra.mxu0 %v415
        %1023 = vmatprep.subr.mxu0 %v405
        %1024 = vmatpush1.msra.mxu0 %v404
        %1025 = vmatprep.subr.mxu0 %v394
        %1026 = vmatpush1.msra.mxu0 %v393
        %1027 = vmatprep.subr.mxu0 %v383
        %1028 = vmatpush1.msra.mxu0 %v382
        %1029 = vmatprep.subr.mxu0 %v372
        %1030 = vmatpush1.msra.mxu0 %v371
        %1031 = vmatprep.subr.mxu0 %v713
        %1032 = vmatpush2.msra.mxu0 %v712
        %1033 = vmatprep.subr.mxu0 %v702
        %1034 = vmatpush2.msra.mxu0 %v701
        %1035 = vmatprep.subr.mxu0 %v691
        %1036 = vmatpush2.msra.mxu0 %v690
        %1037 = vmatprep.subr.mxu0 %v680
        %1038 = vmatpush2.msra.mxu0 %v679
        %1039 = vmatprep.subr.mxu0 %v669
        %1040 = vmatpush2.msra.mxu0 %v668
        %1041 = vmatprep.subr.mxu0 %v658
        %1042 = vmatpush2.msra.mxu0 %v657
        %1043 = vmatprep.subr.mxu0 %v647
        %1044 = vmatpush2.msra.mxu0 %v646
        %1045 = vmatprep.subr.mxu0 %v636
        %1046 = vmatpush2.msra.mxu0 %v635
        %1047 = vmatprep.subr.mxu0 %v625
        %1048 = vmatpush2.msra.mxu0 %v624
        %1049 = vmatprep.subr.mxu0 %v614
        %1050 = vmatpush2.msra.mxu0 %v613
        %1051 = vmatprep.subr.mxu0 %v603
        %1052 = vmatpush2.msra.mxu0 %v602
        %1053 = vmatprep.subr.mxu0 %v592
        %1054 = vmatpush2.msra.mxu0 %v591
        %1055 = vmatprep.subr.mxu0 %v581
        %1056 = vmatpush2.msra.mxu0 %v580
        %1057 = vmatprep.subr.mxu0 %v570
        %1058 = vmatpush2.msra.mxu0 %v569
        %1059 = vmatprep.subr.mxu0 %v559
        %1060 = vmatpush2.msra.mxu0 %v558
        %1061 = vmatprep.subr.mxu0 %v548
        %1062 = vmatpush2.msra.mxu0 %v547
        %1063 = vmatprep.mubr.f32.mxu0 %v362
        %1064 = vmatmul.mubr.f32.gmra.mxu0 %v361
        %v1065 = vpop.f32.mrf.mxu0
        %v1066 = vadd.f32 0.0, %v1065
        %v1067 = vpop.f32.mrf.mxu0
        %v1068 = vadd.f32 0.0, %v1067
        %1069 = vdwg.mxu0
        %1070 = vmatprep.subr.mxu0 0.0
        %1071 = vmatpush1.msra.mxu0 %v538
        %1072 = vmatprep.subr.mxu0 0.0
        %1073 = vmatpush1.msra.mxu0 %v527
        %1074 = vmatprep.subr.mxu0 0.0
        %1075 = vmatpush1.msra.mxu0 %v516
        %1076 = vmatprep.subr.mxu0 0.0
        %1077 = vmatpush1.msra.mxu0 %v505
        %1078 = vmatprep.subr.mxu0 0.0
        %1079 = vmatpush1.msra.mxu0 %v494
        %1080 = vmatprep.subr.mxu0 0.0
        %1081 = vmatpush1.msra.mxu0 %v483
        %1082 = vmatprep.subr.mxu0 0.0
        %1083 = vmatpush1.msra.mxu0 %v472
        %1084 = vmatprep.subr.mxu0 0.0
        %1085 = vmatpush1.msra.mxu0 %v461
        %1086 = vmatprep.subr.mxu0 0.0
        %1087 = vmatpush1.msra.mxu0 %v450
        %1088 = vmatprep.subr.mxu0 0.0
        %1089 = vmatpush1.msra.mxu0 %v439
        %1090 = vmatprep.subr.mxu0 0.0
        %1091 = vmatpush1.msra.mxu0 %v428
        %1092 = vmatprep.subr.mxu0 0.0
        %1093 = vmatpush1.msra.mxu0 %v417
        %1094 = vmatprep.subr.mxu0 0.0
        %1095 = vmatpush1.msra.mxu0 %v406
        %1096 = vmatprep.subr.mxu0 0.0
        %1097 = vmatpush1.msra.mxu0 %v395
        %1098 = vmatprep.subr.mxu0 0.0
        %1099 = vmatpush1.msra.mxu0 %v384
        %1100 = vmatprep.subr.mxu0 0.0
        %1101 = vmatpush1.msra.mxu0 %v373
        %1102 = vmatprep.subr.mxu0 0.0
        %1103 = vmatpush2.msra.mxu0 %v714
        %1104 = vmatprep.subr.mxu0 0.0
        %1105 = vmatpush2.msra.mxu0 %v703
        %1106 = vmatprep.subr.mxu0 0.0
        %1107 = vmatpush2.msra.mxu0 %v692
        %1108 = vmatprep.subr.mxu0 0.0
        %1109 = vmatpush2.msra.mxu0 %v681
        %1110 = vmatprep.subr.mxu0 0.0
        %1111 = vmatpush2.msra.mxu0 %v670
        %1112 = vmatprep.subr.mxu0 0.0
        %1113 = vmatpush2.msra.mxu0 %v659
        %1114 = vmatprep.subr.mxu0 0.0
        %1115 = vmatpush2.msra.mxu0 %v648
        %1116 = vmatprep.subr.mxu0 0.0
        %1117 = vmatpush2.msra.mxu0 %v637
        %1118 = vmatprep.subr.mxu0 0.0
        %1119 = vmatpush2.msra.mxu0 %v626
        %1120 = vmatprep.subr.mxu0 0.0
        %1121 = vmatpush2.msra.mxu0 %v615
        %1122 = vmatprep.subr.mxu0 0.0
        %1123 = vmatpush2.msra.mxu0 %v604
        %1124 = vmatprep.subr.mxu0 0.0
        %1125 = vmatpush2.msra.mxu0 %v593
        %1126 = vmatprep.subr.mxu0 0.0
        %1127 = vmatpush2.msra.mxu0 %v582
        %1128 = vmatprep.subr.mxu0 0.0
        %1129 = vmatpush2.msra.mxu0 %v571
        %1130 = vmatprep.subr.mxu0 0.0
        %1131 = vmatpush2.msra.mxu0 %v560
        %1132 = vmatprep.subr.mxu0 0.0
        %1133 = vmatpush2.msra.mxu0 %v549
        %1134 = vmatprep.mubr.f32.mxu0 %v362
        %1135 = vmatmul.mubr.f32.gmra.mxu0 %v361
        %v1136 = vpop.f32.mrf.mxu0
        %v1137 = vadd.f32 0.0, %v1136
        %v1138 = vpop.f32.mrf.mxu0
        %1139 = vdwg.mxu0
        %vm1140 = vcmp.gt.f32.partialorder %v782, 0.0
        %vm1141 = vcmp.gt.f32.partialorder %v784, 0.0
        %vm1142 = vcmp.gt.f32.partialorder %v853, 0.0
        %vm1143 = vcmp.gt.f32.partialorder %v855, 0.0
        %vm1144 = vcmp.gt.f32.partialorder %v924, 0.0
        %vm1145 = vcmp.gt.f32.partialorder %v926, 0.0
        %vm1146 = vcmp.gt.f32.partialorder %v995, 0.0
        %vm1147 = vcmp.gt.f32.partialorder %v997, 0.0
        %vm1148 = vcmp.gt.f32.partialorder %v1066, 0.0
        %vm1149 = vcmp.gt.f32.partialorder %v1068, 0.0
        %vm1150 = vcmp.gt.f32.partialorder %v1137, 0.0
        %v1151 = vld [vmem:[%s4] sm:$0xff]
        %1153 = vset.pattern.permute.xlu0 0
        %1154 = vperm.xlu0 %1153, %v1151
        %v1155 = vpop.permute.xlu0 %1154
        %v1157 = vmul.f32 %v782, %v1155
        %v1158 = vmul.f32 %v784, %v1155
        %v1159 = vmul.f32 %v853, %v1155
        %v1160 = vmul.f32 %v855, %v1155
        %v1161 = vmul.f32 %v924, %v1155
        %v1162 = vmul.f32 %v926, %v1155
        %v1163 = vmul.f32 %v995, %v1155
        %v1164 = vmul.f32 %v997, %v1155
        %v1165 = vmul.f32 %v1066, %v1155
        %v1166 = vmul.f32 %v1068, %v1155
        %v1167 = vmul.f32 %v1137, %v1155
        %v1168 = vsel %vm1140, %v782, %v1157
        %v1169 = vsel %vm1141, %v784, %v1158
        %v1170 = vsel %vm1142, %v853, %v1159
        %v1171 = vsel %vm1143, %v855, %v1160
        %v1172 = vsel %vm1144, %v924, %v1161
        %v1173 = vsel %vm1145, %v926, %v1162
        %v1174 = vsel %vm1146, %v995, %v1163
        %v1175 = vsel %vm1147, %v997, %v1164
        %v1176 = vsel %vm1148, %v1066, %v1165
        %v1177 = vsel %vm1149, %v1068, %v1166
        %v1178 = vsel %vm1150, %v1137, %v1167
        %v1179 = vld [vmem:[%s2] sm:$0xff]
        %1190 = vrot.lane.b32.xlu0 %v1168, 127
        %v1191 = vpop.permute.xlu0 %1190
        %1192 = vrot.lane.b32.xlu0 %v1169, 127
        %v1193 = vpop.permute.xlu0 %1192
        %1194 = vrot.lane.b32.xlu0 %v1170, 127
        %v1195 = vpop.permute.xlu0 %1194
        %1196 = vrot.lane.b32.xlu0 %v1171, 127
        %v1197 = vpop.permute.xlu0 %1196
        %1198 = vrot.lane.b32.xlu0 %v1172, 127
        %v1199 = vpop.permute.xlu0 %1198
        %1200 = vrot.lane.b32.xlu0 %v1173, 127
        %v1201 = vpop.permute.xlu0 %1200
        %1202 = vrot.lane.b32.xlu0 %v1174, 127
        %v1203 = vpop.permute.xlu0 %1202
        %1204 = vrot.lane.b32.xlu0 %v1175, 127
        %v1205 = vpop.permute.xlu0 %1204
        %1206 = vrot.lane.b32.xlu0 %v1176, 127
        %v1207 = vpop.permute.xlu0 %1206
        %1208 = vrot.lane.b32.xlu0 %v1177, 127
        %v1209 = vpop.permute.xlu0 %1208
        %vm1210 = vcmask 1039360
        %v1211 = vsel %vm1210, %v1191, %v1193
        %v1212 = vsel %vm1210, %v1193, %v1195
        %v1213 = vsel %vm1210, %v1195, %v1197
        %v1214 = vsel %vm1210, %v1197, %v1199
        %v1215 = vsel %vm1210, %v1199, %v1201
        %v1216 = vsel %vm1210, %v1201, %v1203
        %v1217 = vsel %vm1210, %v1203, %v1205
        %v1218 = vsel %vm1210, %v1205, %v1207
        %v1219 = vsel %vm1210, %v1207, %v1209
        %1230 = vrot.lane.b32.xlu0 %v1168, 126
        %v1231 = vpop.permute.xlu0 %1230
        %1232 = vrot.lane.b32.xlu0 %v1169, 126
        %v1233 = vpop.permute.xlu0 %1232
        %1234 = vrot.lane.b32.xlu0 %v1170, 126
        %v1235 = vpop.permute.xlu0 %1234
        %1236 = vrot.lane.b32.xlu0 %v1171, 126
        %v1237 = vpop.permute.xlu0 %1236
        %1238 = vrot.lane.b32.xlu0 %v1172, 126
        %v1239 = vpop.permute.xlu0 %1238
        %1240 = vrot.lane.b32.xlu0 %v1173, 126
        %v1241 = vpop.permute.xlu0 %1240
        %1242 = vrot.lane.b32.xlu0 %v1174, 126
        %v1243 = vpop.permute.xlu0 %1242
        %1244 = vrot.lane.b32.xlu0 %v1175, 126
        %v1245 = vpop.permute.xlu0 %1244
        %1246 = vrot.lane.b32.xlu0 %v1176, 126
        %v1247 = vpop.permute.xlu0 %1246
        %1248 = vrot.lane.b32.xlu0 %v1177, 126
        %v1249 = vpop.permute.xlu0 %1248
        %vm1250 = vcmask 1031168
        %v1251 = vsel %vm1250, %v1231, %v1233
        %v1252 = vsel %vm1250, %v1233, %v1235
        %v1253 = vsel %vm1250, %v1235, %v1237
        %v1254 = vsel %vm1250, %v1237, %v1239
        %v1255 = vsel %vm1250, %v1239, %v1241
        %v1256 = vsel %vm1250, %v1241, %v1243
        %v1257 = vsel %vm1250, %v1243, %v1245
        %v1258 = vsel %vm1250, %v1245, %v1247
        %v1259 = vsel %vm1250, %v1247, %v1249
        %1270 = vrot.lane.b32.xlu0 %v1168, 94
        %v1271 = vpop.permute.xlu0 %1270
        %1272 = vrot.lane.b32.xlu0 %v1169, 94
        %v1273 = vpop.permute.xlu0 %1272
        %1274 = vrot.lane.b32.xlu0 %v1170, 94
        %v1275 = vpop.permute.xlu0 %1274
        %1276 = vrot.lane.b32.xlu0 %v1171, 94
        %v1277 = vpop.permute.xlu0 %1276
        %1278 = vrot.lane.b32.xlu0 %v1172, 94
        %v1279 = vpop.permute.xlu0 %1278
        %1280 = vrot.lane.b32.xlu0 %v1173, 94
        %v1281 = vpop.permute.xlu0 %1280
        %1282 = vrot.lane.b32.xlu0 %v1174, 94
        %v1283 = vpop.permute.xlu0 %1282
        %1284 = vrot.lane.b32.xlu0 %v1175, 94
        %v1285 = vpop.permute.xlu0 %1284
        %1286 = vrot.lane.b32.xlu0 %v1176, 94
        %v1287 = vpop.permute.xlu0 %1286
        %1288 = vrot.lane.b32.xlu0 %v1177, 94
        %v1289 = vpop.permute.xlu0 %1288
        %vm1290 = vcmask 769024
        %v1291 = vsel %vm1290, %v1271, %v1273
        %v1292 = vsel %vm1290, %v1273, %v1275
        %v1293 = vsel %vm1290, %v1275, %v1277
        %v1294 = vsel %vm1290, %v1277, %v1279
        %v1295 = vsel %vm1290, %v1279, %v1281
        %v1296 = vsel %vm1290, %v1281, %v1283
        %v1297 = vsel %vm1290, %v1283, %v1285
        %v1298 = vsel %vm1290, %v1285, %v1287
        %v1299 = vsel %vm1290, %v1287, %v1289
        %1310 = vrot.lane.b32.xlu0 %v1168, 93
        %v1311 = vpop.permute.xlu0 %1310
        %1312 = vrot.lane.b32.xlu0 %v1169, 93
        %v1313 = vpop.permute.xlu0 %1312
        %1314 = vrot.lane.b32.xlu0 %v1170, 93
        %v1315 = vpop.permute.xlu0 %1314
        %1316 = vrot.lane.b32.xlu0 %v1171, 93
        %v1317 = vpop.permute.xlu0 %1316
        %1318 = vrot.lane.b32.xlu0 %v1172, 93
        %v1319 = vpop.permute.xlu0 %1318
        %1320 = vrot.lane.b32.xlu0 %v1173, 93
        %v1321 = vpop.permute.xlu0 %1320
        %1322 = vrot.lane.b32.xlu0 %v1174, 93
        %v1323 = vpop.permute.xlu0 %1322
        %1324 = vrot.lane.b32.xlu0 %v1175, 93
        %v1325 = vpop.permute.xlu0 %1324
        %1326 = vrot.lane.b32.xlu0 %v1176, 93
        %v1327 = vpop.permute.xlu0 %1326
        %1328 = vrot.lane.b32.xlu0 %v1177, 93
        %v1329 = vpop.permute.xlu0 %1328
        %vm1330 = vcmask 760832
        %v1331 = vsel %vm1330, %v1311, %v1313
        %v1332 = vsel %vm1330, %v1313, %v1315
        %v1333 = vsel %vm1330, %v1315, %v1317
        %v1334 = vsel %vm1330, %v1317, %v1319
        %v1335 = vsel %vm1330, %v1319, %v1321
        %v1336 = vsel %vm1330, %v1321, %v1323
        %v1337 = vsel %vm1330, %v1323, %v1325
        %v1338 = vsel %vm1330, %v1325, %v1327
        %v1339 = vsel %vm1330, %v1327, %v1329
        %1350 = vrot.lane.b32.xlu0 %v1168, 92
        %v1351 = vpop.permute.xlu0 %1350
        %1352 = vrot.lane.b32.xlu0 %v1169, 92
        %v1353 = vpop.permute.xlu0 %1352
        %1354 = vrot.lane.b32.xlu0 %v1170, 92
        %v1355 = vpop.permute.xlu0 %1354
        %1356 = vrot.lane.b32.xlu0 %v1171, 92
        %v1357 = vpop.permute.xlu0 %1356
        %1358 = vrot.lane.b32.xlu0 %v1172, 92
        %v1359 = vpop.permute.xlu0 %1358
        %1360 = vrot.lane.b32.xlu0 %v1173, 92
        %v1361 = vpop.permute.xlu0 %1360
        %1362 = vrot.lane.b32.xlu0 %v1174, 92
        %v1363 = vpop.permute.xlu0 %1362
        %1364 = vrot.lane.b32.xlu0 %v1175, 92
        %v1365 = vpop.permute.xlu0 %1364
        %1366 = vrot.lane.b32.xlu0 %v1176, 92
        %v1367 = vpop.permute.xlu0 %1366
        %1368 = vrot.lane.b32.xlu0 %v1177, 92
        %v1369 = vpop.permute.xlu0 %1368
        %vm1370 = vcmask 752640
        %v1371 = vsel %vm1370, %v1351, %v1353
        %v1372 = vsel %vm1370, %v1353, %v1355
        %v1373 = vsel %vm1370, %v1355, %v1357
        %v1374 = vsel %vm1370, %v1357, %v1359
        %v1375 = vsel %vm1370, %v1359, %v1361
        %v1376 = vsel %vm1370, %v1361, %v1363
        %v1377 = vsel %vm1370, %v1363, %v1365
        %v1378 = vsel %vm1370, %v1365, %v1367
        %v1379 = vsel %vm1370, %v1367, %v1369
        %1391 = vrot.lane.b32.xlu0 %v1168, 60
        %v1392 = vpop.permute.xlu0 %1391
        %1393 = vrot.lane.b32.xlu0 %v1169, 60
        %v1394 = vpop.permute.xlu0 %1393
        %1395 = vrot.lane.b32.xlu0 %v1170, 60
        %v1396 = vpop.permute.xlu0 %1395
        %1397 = vrot.lane.b32.xlu0 %v1171, 60
        %v1398 = vpop.permute.xlu0 %1397
        %1399 = vrot.lane.b32.xlu0 %v1172, 60
        %v1400 = vpop.permute.xlu0 %1399
        %1401 = vrot.lane.b32.xlu0 %v1173, 60
        %v1402 = vpop.permute.xlu0 %1401
        %1403 = vrot.lane.b32.xlu0 %v1174, 60
        %v1404 = vpop.permute.xlu0 %1403
        %1405 = vrot.lane.b32.xlu0 %v1175, 60
        %v1406 = vpop.permute.xlu0 %1405
        %1407 = vrot.lane.b32.xlu0 %v1176, 60
        %v1408 = vpop.permute.xlu0 %1407
        %1409 = vrot.lane.b32.xlu0 %v1177, 60
        %v1410 = vpop.permute.xlu0 %1409
        %1411 = vrot.lane.b32.xlu0 %v1178, 60
        %v1412 = vpop.permute.xlu0 %1411
        %vm1413 = vcmask 490496
        %v1414 = vsel %vm1413, %v1392, %v1394
        %v1415 = vsel %vm1413, %v1394, %v1396
        %v1416 = vsel %vm1413, %v1396, %v1398
        %v1417 = vsel %vm1413, %v1398, %v1400
        %v1418 = vsel %vm1413, %v1400, %v1402
        %v1419 = vsel %vm1413, %v1402, %v1404
        %v1420 = vsel %vm1413, %v1404, %v1406
        %v1421 = vsel %vm1413, %v1406, %v1408
        %v1422 = vsel %vm1413, %v1408, %v1410
        %v1423 = vsel %vm1413, %v1410, %v1412
        %1434 = vrot.lane.b32.xlu0 %v1168, 59
        %v1435 = vpop.permute.xlu0 %1434
        %1436 = vrot.lane.b32.xlu0 %v1169, 59
        %v1437 = vpop.permute.xlu0 %1436
        %1438 = vrot.lane.b32.xlu0 %v1170, 59
        %v1439 = vpop.permute.xlu0 %1438
        %1440 = vrot.lane.b32.xlu0 %v1171, 59
        %v1441 = vpop.permute.xlu0 %1440
        %1442 = vrot.lane.b32.xlu0 %v1172, 59
        %v1443 = vpop.permute.xlu0 %1442
        %1444 = vrot.lane.b32.xlu0 %v1173, 59
        %v1445 = vpop.permute.xlu0 %1444
        %1446 = vrot.lane.b32.xlu0 %v1174, 59
        %v1447 = vpop.permute.xlu0 %1446
        %1448 = vrot.lane.b32.xlu0 %v1175, 59
        %v1449 = vpop.permute.xlu0 %1448
        %1450 = vrot.lane.b32.xlu0 %v1176, 59
        %v1451 = vpop.permute.xlu0 %1450
        %1452 = vrot.lane.b32.xlu0 %v1177, 59
        %v1453 = vpop.permute.xlu0 %1452
        %1454 = vrot.lane.b32.xlu0 %v1178, 59
        %v1455 = vpop.permute.xlu0 %1454
        %vm1456 = vcmask 482304
        %v1457 = vsel %vm1456, %v1435, %v1437
        %v1458 = vsel %vm1456, %v1437, %v1439
        %v1459 = vsel %vm1456, %v1439, %v1441
        %v1460 = vsel %vm1456, %v1441, %v1443
        %v1461 = vsel %vm1456, %v1443, %v1445
        %v1462 = vsel %vm1456, %v1445, %v1447
        %v1463 = vsel %vm1456, %v1447, %v1449
        %v1464 = vsel %vm1456, %v1449, %v1451
        %v1465 = vsel %vm1456, %v1451, %v1453
        %v1466 = vsel %vm1456, %v1453, %v1455
        %1477 = vrot.lane.b32.xlu0 %v1168, 58
        %v1478 = vpop.permute.xlu0 %1477
        %1479 = vrot.lane.b32.xlu0 %v1169, 58
        %v1480 = vpop.permute.xlu0 %1479
        %1481 = vrot.lane.b32.xlu0 %v1170, 58
        %v1482 = vpop.permute.xlu0 %1481
        %1483 = vrot.lane.b32.xlu0 %v1171, 58
        %v1484 = vpop.permute.xlu0 %1483
        %1485 = vrot.lane.b32.xlu0 %v1172, 58
        %v1486 = vpop.permute.xlu0 %1485
        %1487 = vrot.lane.b32.xlu0 %v1173, 58
        %v1488 = vpop.permute.xlu0 %1487
        %1489 = vrot.lane.b32.xlu0 %v1174, 58
        %v1490 = vpop.permute.xlu0 %1489
        %1491 = vrot.lane.b32.xlu0 %v1175, 58
        %v1492 = vpop.permute.xlu0 %1491
        %1493 = vrot.lane.b32.xlu0 %v1176, 58
        %v1494 = vpop.permute.xlu0 %1493
        %1495 = vrot.lane.b32.xlu0 %v1177, 58
        %v1496 = vpop.permute.xlu0 %1495
        %1497 = vrot.lane.b32.xlu0 %v1178, 58
        %v1498 = vpop.permute.xlu0 %1497
        %vm1499 = vcmask 474112
        %v1500 = vsel %vm1499, %v1478, %v1480
        %v1501 = vsel %vm1499, %v1480, %v1482
        %v1502 = vsel %vm1499, %v1482, %v1484
        %v1503 = vsel %vm1499, %v1484, %v1486
        %v1504 = vsel %vm1499, %v1486, %v1488
        %v1505 = vsel %vm1499, %v1488, %v1490
        %v1506 = vsel %vm1499, %v1490, %v1492
        %v1507 = vsel %vm1499, %v1492, %v1494
        %v1508 = vsel %vm1499, %v1494, %v1496
        %v1509 = vsel %vm1499, %v1496, %v1498
        %v1520 = vld [vmem:[%s3] sm:$0xff]
        %1522 = vset.pattern.permute.xlu0 0
        %1523 = vperm.xlu0 %1522, %v1520
        %v1524 = vpop.permute.xlu0 %1523
        %vm1526 = vcmask 588800
        %v1528 = vsel %vm1526, %v1179, 0
        %1530 = vmatprep.subr.mxu0 0.0
        %1531 = vmatpush1.msra.mxu0 0.0
        %1532 = vmatprep.subr.mxu0 0.0
        %1533 = vmatpush1.msra.mxu0 0.0
        %1534 = vmatprep.subr.mxu0 0.0
        %1535 = vmatpush1.msra.mxu0 0.0
        %1536 = vmatprep.subr.mxu0 0.0
        %1537 = vmatpush1.msra.mxu0 0.0
        %1538 = vmatprep.subr.mxu0 0.0
        %1539 = vmatpush1.msra.mxu0 0.0
        %1540 = vmatprep.subr.mxu0 0.0
        %1541 = vmatpush1.msra.mxu0 0.0
        %1542 = vmatprep.subr.mxu0 0.0
        %1543 = vmatpush1.msra.mxu0 0.0
        %1544 = vmatprep.subr.mxu0 %v1501
        %1545 = vmatpush1.msra.mxu0 %v1500
        %1546 = vmatprep.subr.mxu0 %v1458
        %1547 = vmatpush1.msra.mxu0 %v1457
        %1548 = vmatprep.subr.mxu0 %v1415
        %1549 = vmatpush1.msra.mxu0 %v1414
        %1550 = vmatprep.subr.mxu0 %v1372
        %1551 = vmatpush1.msra.mxu0 %v1371
        %1552 = vmatprep.subr.mxu0 %v1332
        %1553 = vmatpush1.msra.mxu0 %v1331
        %1554 = vmatprep.subr.mxu0 %v1292
        %1555 = vmatpush1.msra.mxu0 %v1291
        %1556 = vmatprep.subr.mxu0 %v1252
        %1557 = vmatpush1.msra.mxu0 %v1251
        %1558 = vmatprep.subr.mxu0 %v1212
        %1559 = vmatpush1.msra.mxu0 %v1211
        %1560 = vmatprep.subr.mxu0 %v1169
        %1561 = vmatpush1.msra.mxu0 %v1168
        %1562 = vmatprep.subr.mxu0 0.0
        %1563 = vmatpush2.msra.mxu0 0.0
        %1564 = vmatprep.subr.mxu0 0.0
        %1565 = vmatpush2.msra.mxu0 0.0
        %1566 = vmatprep.subr.mxu0 0.0
        %1567 = vmatpush2.msra.mxu0 0.0
        %1568 = vmatprep.subr.mxu0 0.0
        %1569 = vmatpush2.msra.mxu0 0.0
        %1570 = vmatprep.subr.mxu0 0.0
        %1571 = vmatpush2.msra.mxu0 0.0
        %1572 = vmatprep.subr.mxu0 0.0
        %1573 = vmatpush2.msra.mxu0 0.0
        %1574 = vmatprep.subr.mxu0 0.0
        %1575 = vmatpush2.msra.mxu0 0.0
        %1576 = vmatprep.subr.mxu0 0.0
        %1577 = vmatpush2.msra.mxu0 0.0
        %1578 = vmatprep.subr.mxu0 0.0
        %1579 = vmatpush2.msra.mxu0 0.0
        %1580 = vmatprep.subr.mxu0 0.0
        %1581 = vmatpush2.msra.mxu0 0.0
        %1582 = vmatprep.subr.mxu0 0.0
        %1583 = vmatpush2.msra.mxu0 0.0
        %1584 = vmatprep.subr.mxu0 0.0
        %1585 = vmatpush2.msra.mxu0 0.0
        %1586 = vmatprep.subr.mxu0 0.0
        %1587 = vmatpush2.msra.mxu0 0.0
        %1588 = vmatprep.subr.mxu0 0.0
        %1589 = vmatpush2.msra.mxu0 0.0
        %1590 = vmatprep.subr.mxu0 0.0
        %1591 = vmatpush2.msra.mxu0 0.0
        %1592 = vmatprep.subr.mxu0 0.0
        %1593 = vmatpush2.msra.mxu0 0.0
        %1594 = vmatprep.mubr.f32.mxu0 0.0
        %1595 = vmatmul.mubr.f32.gmra.mxu0 %v1528
        %v1596 = vpop.f32.mrf.mxu0
        %v1597 = vadd.f32 %v1524, %v1596
        %v1598 = vpop.f32.mrf.mxu0
        %v1599 = vadd.f32 %v1524, %v1598
        %1600 = vdwg.mxu0
        %1601 = vmatprep.subr.mxu0 0.0
        %1602 = vmatpush1.msra.mxu0 0.0
        %1603 = vmatprep.subr.mxu0 0.0
        %1604 = vmatpush1.msra.mxu0 0.0
        %1605 = vmatprep.subr.mxu0 0.0
        %1606 = vmatpush1.msra.mxu0 0.0
        %1607 = vmatprep.subr.mxu0 0.0
        %1608 = vmatpush1.msra.mxu0 0.0
        %1609 = vmatprep.subr.mxu0 0.0
        %1610 = vmatpush1.msra.mxu0 0.0
        %1611 = vmatprep.subr.mxu0 0.0
        %1612 = vmatpush1.msra.mxu0 0.0
        %1613 = vmatprep.subr.mxu0 0.0
        %1614 = vmatpush1.msra.mxu0 0.0
        %1615 = vmatprep.subr.mxu0 %v1503
        %1616 = vmatpush1.msra.mxu0 %v1502
        %1617 = vmatprep.subr.mxu0 %v1460
        %1618 = vmatpush1.msra.mxu0 %v1459
        %1619 = vmatprep.subr.mxu0 %v1417
        %1620 = vmatpush1.msra.mxu0 %v1416
        %1621 = vmatprep.subr.mxu0 %v1374
        %1622 = vmatpush1.msra.mxu0 %v1373
        %1623 = vmatprep.subr.mxu0 %v1334
        %1624 = vmatpush1.msra.mxu0 %v1333
        %1625 = vmatprep.subr.mxu0 %v1294
        %1626 = vmatpush1.msra.mxu0 %v1293
        %1627 = vmatprep.subr.mxu0 %v1254
        %1628 = vmatpush1.msra.mxu0 %v1253
        %1629 = vmatprep.subr.mxu0 %v1214
        %1630 = vmatpush1.msra.mxu0 %v1213
        %1631 = vmatprep.subr.mxu0 %v1171
        %1632 = vmatpush1.msra.mxu0 %v1170
        %1633 = vmatprep.subr.mxu0 0.0
        %1634 = vmatpush2.msra.mxu0 0.0
        %1635 = vmatprep.subr.mxu0 0.0
        %1636 = vmatpush2.msra.mxu0 0.0
        %1637 = vmatprep.subr.mxu0 0.0
        %1638 = vmatpush2.msra.mxu0 0.0
        %1639 = vmatprep.subr.mxu0 0.0
        %1640 = vmatpush2.msra.mxu0 0.0
        %1641 = vmatprep.subr.mxu0 0.0
        %1642 = vmatpush2.msra.mxu0 0.0
        %1643 = vmatprep.subr.mxu0 0.0
        %1644 = vmatpush2.msra.mxu0 0.0
        %1645 = vmatprep.subr.mxu0 0.0
        %1646 = vmatpush2.msra.mxu0 0.0
        %1647 = vmatprep.subr.mxu0 0.0
        %1648 = vmatpush2.msra.mxu0 0.0
        %1649 = vmatprep.subr.mxu0 0.0
        %1650 = vmatpush2.msra.mxu0 0.0
        %1651 = vmatprep.subr.mxu0 0.0
        %1652 = vmatpush2.msra.mxu0 0.0
        %1653 = vmatprep.subr.mxu0 0.0
        %1654 = vmatpush2.msra.mxu0 0.0
        %1655 = vmatprep.subr.mxu0 0.0
        %1656 = vmatpush2.msra.mxu0 0.0
        %1657 = vmatprep.subr.mxu0 0.0
        %1658 = vmatpush2.msra.mxu0 0.0
        %1659 = vmatprep.subr.mxu0 0.0
        %1660 = vmatpush2.msra.mxu0 0.0
        %1661 = vmatprep.subr.mxu0 0.0
        %1662 = vmatpush2.msra.mxu0 0.0
        %1663 = vmatprep.subr.mxu0 0.0
        %1664 = vmatpush2.msra.mxu0 0.0
        %1665 = vmatprep.mubr.f32.mxu0 0.0
        %1666 = vmatmul.mubr.f32.gmra.mxu0 %v1528
        %v1667 = vpop.f32.mrf.mxu0
        %v1668 = vadd.f32 %v1524, %v1667
        %v1669 = vpop.f32.mrf.mxu0
        %v1670 = vadd.f32 %v1524, %v1669
        %1671 = vdwg.mxu0
        %1672 = vmatprep.subr.mxu0 0.0
        %1673 = vmatpush1.msra.mxu0 0.0
        %1674 = vmatprep.subr.mxu0 0.0
        %1675 = vmatpush1.msra.mxu0 0.0
        %1676 = vmatprep.subr.mxu0 0.0
        %1677 = vmatpush1.msra.mxu0 0.0
        %1678 = vmatprep.subr.mxu0 0.0
        %1679 = vmatpush1.msra.mxu0 0.0
        %1680 = vmatprep.subr.mxu0 0.0
        %1681 = vmatpush1.msra.mxu0 0.0
        %1682 = vmatprep.subr.mxu0 0.0
        %1683 = vmatpush1.msra.mxu0 0.0
        %1684 = vmatprep.subr.mxu0 0.0
        %1685 = vmatpush1.msra.mxu0 0.0
        %1686 = vmatprep.subr.mxu0 %v1505
        %1687 = vmatpush1.msra.mxu0 %v1504
        %1688 = vmatprep.subr.mxu0 %v1462
        %1689 = vmatpush1.msra.mxu0 %v1461
        %1690 = vmatprep.subr.mxu0 %v1419
        %1691 = vmatpush1.msra.mxu0 %v1418
        %1692 = vmatprep.subr.mxu0 %v1376
        %1693 = vmatpush1.msra.mxu0 %v1375
        %1694 = vmatprep.subr.mxu0 %v1336
        %1695 = vmatpush1.msra.mxu0 %v1335
        %1696 = vmatprep.subr.mxu0 %v1296
        %1697 = vmatpush1.msra.mxu0 %v1295
        %1698 = vmatprep.subr.mxu0 %v1256
        %1699 = vmatpush1.msra.mxu0 %v1255
        %1700 = vmatprep.subr.mxu0 %v1216
        %1701 = vmatpush1.msra.mxu0 %v1215
        %1702 = vmatprep.subr.mxu0 %v1173
        %1703 = vmatpush1.msra.mxu0 %v1172
        %1704 = vmatprep.subr.mxu0 0.0
        %1705 = vmatpush2.msra.mxu0 0.0
        %1706 = vmatprep.subr.mxu0 0.0
        %1707 = vmatpush2.msra.mxu0 0.0
        %1708 = vmatprep.subr.mxu0 0.0
        %1709 = vmatpush2.msra.mxu0 0.0
        %1710 = vmatprep.subr.mxu0 0.0
        %1711 = vmatpush2.msra.mxu0 0.0
        %1712 = vmatprep.subr.mxu0 0.0
        %1713 = vmatpush2.msra.mxu0 0.0
        %1714 = vmatprep.subr.mxu0 0.0
        %1715 = vmatpush2.msra.mxu0 0.0
        %1716 = vmatprep.subr.mxu0 0.0
        %1717 = vmatpush2.msra.mxu0 0.0
        %1718 = vmatprep.subr.mxu0 0.0
        %1719 = vmatpush2.msra.mxu0 0.0
        %1720 = vmatprep.subr.mxu0 0.0
        %1721 = vmatpush2.msra.mxu0 0.0
        %1722 = vmatprep.subr.mxu0 0.0
        %1723 = vmatpush2.msra.mxu0 0.0
        %1724 = vmatprep.subr.mxu0 0.0
        %1725 = vmatpush2.msra.mxu0 0.0
        %1726 = vmatprep.subr.mxu0 0.0
        %1727 = vmatpush2.msra.mxu0 0.0
        %1728 = vmatprep.subr.mxu0 0.0
        %1729 = vmatpush2.msra.mxu0 0.0
        %1730 = vmatprep.subr.mxu0 0.0
        %1731 = vmatpush2.msra.mxu0 0.0
        %1732 = vmatprep.subr.mxu0 0.0
        %1733 = vmatpush2.msra.mxu0 0.0
        %1734 = vmatprep.subr.mxu0 0.0
        %1735 = vmatpush2.msra.mxu0 0.0
        %1736 = vmatprep.mubr.f32.mxu0 0.0
        %1737 = vmatmul.mubr.f32.gmra.mxu0 %v1528
        %v1738 = vpop.f32.mrf.mxu0
        %v1739 = vadd.f32 %v1524, %v1738
        %v1740 = vpop.f32.mrf.mxu0
        %v1741 = vadd.f32 %v1524, %v1740
        %1742 = vdwg.mxu0
        %1743 = vmatprep.subr.mxu0 0.0
        %1744 = vmatpush1.msra.mxu0 0.0
        %1745 = vmatprep.subr.mxu0 0.0
        %1746 = vmatpush1.msra.mxu0 0.0
        %1747 = vmatprep.subr.mxu0 0.0
        %1748 = vmatpush1.msra.mxu0 0.0
        %1749 = vmatprep.subr.mxu0 0.0
        %1750 = vmatpush1.msra.mxu0 0.0
        %1751 = vmatprep.subr.mxu0 0.0
        %1752 = vmatpush1.msra.mxu0 0.0
        %1753 = vmatprep.subr.mxu0 0.0
        %1754 = vmatpush1.msra.mxu0 0.0
        %1755 = vmatprep.subr.mxu0 0.0
        %1756 = vmatpush1.msra.mxu0 0.0
        %1757 = vmatprep.subr.mxu0 %v1507
        %1758 = vmatpush1.msra.mxu0 %v1506
        %1759 = vmatprep.subr.mxu0 %v1464
        %1760 = vmatpush1.msra.mxu0 %v1463
        %1761 = vmatprep.subr.mxu0 %v1421
        %1762 = vmatpush1.msra.mxu0 %v1420
        %1763 = vmatprep.subr.mxu0 %v1378
        %1764 = vmatpush1.msra.mxu0 %v1377
        %1765 = vmatprep.subr.mxu0 %v1338
        %1766 = vmatpush1.msra.mxu0 %v1337
        %1767 = vmatprep.subr.mxu0 %v1298
        %1768 = vmatpush1.msra.mxu0 %v1297
        %1769 = vmatprep.subr.mxu0 %v1258
        %1770 = vmatpush1.msra.mxu0 %v1257
        %1771 = vmatprep.subr.mxu0 %v1218
        %1772 = vmatpush1.msra.mxu0 %v1217
        %1773 = vmatprep.subr.mxu0 %v1175
        %1774 = vmatpush1.msra.mxu0 %v1174
        %1775 = vmatprep.subr.mxu0 0.0
        %1776 = vmatpush2.msra.mxu0 0.0
        %1777 = vmatprep.subr.mxu0 0.0
        %1778 = vmatpush2.msra.mxu0 0.0
        %1779 = vmatprep.subr.mxu0 0.0
        %1780 = vmatpush2.msra.mxu0 0.0
        %1781 = vmatprep.subr.mxu0 0.0
        %1782 = vmatpush2.msra.mxu0 0.0
        %1783 = vmatprep.subr.mxu0 0.0
        %1784 = vmatpush2.msra.mxu0 0.0
        %1785 = vmatprep.subr.mxu0 0.0
        %1786 = vmatpush2.msra.mxu0 0.0
        %1787 = vmatprep.subr.mxu0 0.0
        %1788 = vmatpush2.msra.mxu0 0.0
        %1789 = vmatprep.subr.mxu0 0.0
        %1790 = vmatpush2.msra.mxu0 0.0
        %1791 = vmatprep.subr.mxu0 0.0
        %1792 = vmatpush2.msra.mxu0 0.0
        %1793 = vmatprep.subr.mxu0 0.0
        %1794 = vmatpush2.msra.mxu0 0.0
        %1795 = vmatprep.subr.mxu0 0.0
        %1796 = vmatpush2.msra.mxu0 0.0
        %1797 = vmatprep.subr.mxu0 0.0
        %1798 = vmatpush2.msra.mxu0 0.0
        %1799 = vmatprep.subr.mxu0 0.0
        %1800 = vmatpush2.msra.mxu0 0.0
        %1801 = vmatprep.subr.mxu0 0.0
        %1802 = vmatpush2.msra.mxu0 0.0
        %1803 = vmatprep.subr.mxu0 0.0
        %1804 = vmatpush2.msra.mxu0 0.0
        %1805 = vmatprep.subr.mxu0 0.0
        %1806 = vmatpush2.msra.mxu0 0.0
        %1807 = vmatprep.mubr.f32.mxu0 0.0
        %1808 = vmatmul.mubr.f32.gmra.mxu0 %v1528
        %v1809 = vpop.f32.mrf.mxu0
        %v1810 = vadd.f32 %v1524, %v1809
        %v1811 = vpop.f32.mrf.mxu0
        %v1812 = vadd.f32 %v1524, %v1811
        %1813 = vdwg.mxu0
        %1814 = vmatprep.subr.mxu0 0.0
        %1815 = vmatpush1.msra.mxu0 0.0
        %1816 = vmatprep.subr.mxu0 0.0
        %1817 = vmatpush1.msra.mxu0 0.0
        %1818 = vmatprep.subr.mxu0 0.0
        %1819 = vmatpush1.msra.mxu0 0.0
        %1820 = vmatprep.subr.mxu0 0.0
        %1821 = vmatpush1.msra.mxu0 0.0
        %1822 = vmatprep.subr.mxu0 0.0
        %1823 = vmatpush1.msra.mxu0 0.0
        %1824 = vmatprep.subr.mxu0 0.0
        %1825 = vmatpush1.msra.mxu0 0.0
        %1826 = vmatprep.subr.mxu0 0.0
        %1827 = vmatpush1.msra.mxu0 0.0
        %1828 = vmatprep.subr.mxu0 %v1509
        %1829 = vmatpush1.msra.mxu0 %v1508
        %1830 = vmatprep.subr.mxu0 %v1466
        %1831 = vmatpush1.msra.mxu0 %v1465
        %1832 = vmatprep.subr.mxu0 %v1423
        %1833 = vmatpush1.msra.mxu0 %v1422
        %1834 = vmatprep.subr.mxu0 %v1369
        %1835 = vmatpush1.msra.mxu0 %v1379
        %1836 = vmatprep.subr.mxu0 %v1329
        %1837 = vmatpush1.msra.mxu0 %v1339
        %1838 = vmatprep.subr.mxu0 %v1289
        %1839 = vmatpush1.msra.mxu0 %v1299
        %1840 = vmatprep.subr.mxu0 %v1249
        %1841 = vmatpush1.msra.mxu0 %v1259
        %1842 = vmatprep.subr.mxu0 %v1209
        %1843 = vmatpush1.msra.mxu0 %v1219
        %1844 = vmatprep.subr.mxu0 %v1177
        %1845 = vmatpush1.msra.mxu0 %v1176
        %1846 = vmatprep.subr.mxu0 0.0
        %1847 = vmatpush2.msra.mxu0 0.0
        %1848 = vmatprep.subr.mxu0 0.0
        %1849 = vmatpush2.msra.mxu0 0.0
        %1850 = vmatprep.subr.mxu0 0.0
        %1851 = vmatpush2.msra.mxu0 0.0
        %1852 = vmatprep.subr.mxu0 0.0
        %1853 = vmatpush2.msra.mxu0 0.0
        %1854 = vmatprep.subr.mxu0 0.0
        %1855 = vmatpush2.msra.mxu0 0.0
        %1856 = vmatprep.subr.mxu0 0.0
        %1857 = vmatpush2.msra.mxu0 0.0
        %1858 = vmatprep.subr.mxu0 0.0
        %1859 = vmatpush2.msra.mxu0 0.0
        %1860 = vmatprep.subr.mxu0 0.0
        %1861 = vmatpush2.msra.mxu0 0.0
        %1862 = vmatprep.subr.mxu0 0.0
        %1863 = vmatpush2.msra.mxu0 0.0
        %1864 = vmatprep.subr.mxu0 0.0
        %1865 = vmatpush2.msra.mxu0 0.0
        %1866 = vmatprep.subr.mxu0 0.0
        %1867 = vmatpush2.msra.mxu0 0.0
        %1868 = vmatprep.subr.mxu0 0.0
        %1869 = vmatpush2.msra.mxu0 0.0
        %1870 = vmatprep.subr.mxu0 0.0
        %1871 = vmatpush2.msra.mxu0 0.0
        %1872 = vmatprep.subr.mxu0 0.0
        %1873 = vmatpush2.msra.mxu0 0.0
        %1874 = vmatprep.subr.mxu0 0.0
        %1875 = vmatpush2.msra.mxu0 0.0
        %1876 = vmatprep.subr.mxu0 0.0
        %1877 = vmatpush2.msra.mxu0 0.0
        %1878 = vmatprep.mubr.f32.mxu0 0.0
        %1879 = vmatmul.mubr.f32.gmra.mxu0 %v1528
        %v1880 = vpop.f32.mrf.mxu0
        %v1881 = vadd.f32 %v1524, %v1880
        %v1882 = vpop.f32.mrf.mxu0
        %v1883 = vadd.f32 %v1524, %v1882
        %1884 = vdwg.mxu0
        %vm1885 = vcmp.gt.f32.partialorder %v1597, 0.0
        %vm1886 = vcmp.gt.f32.partialorder %v1599, 0.0
        %vm1887 = vcmp.gt.f32.partialorder %v1668, 0.0
        %vm1888 = vcmp.gt.f32.partialorder %v1670, 0.0
        %vm1889 = vcmp.gt.f32.partialorder %v1739, 0.0
        %vm1890 = vcmp.gt.f32.partialorder %v1741, 0.0
        %vm1891 = vcmp.gt.f32.partialorder %v1810, 0.0
        %vm1892 = vcmp.gt.f32.partialorder %v1812, 0.0
        %vm1893 = vcmp.gt.f32.partialorder %v1881, 0.0
        %vm1894 = vcmp.gt.f32.partialorder %v1883, 0.0
        %v1895 = vld [vmem:[%s7] sm:$0xff]
        %1897 = vset.pattern.permute.xlu0 0
        %1898 = vperm.xlu0 %1897, %v1895
        %v1899 = vpop.permute.xlu0 %1898
        %v1901 = vmul.f32 %v1597, %v1899
        %v1902 = vmul.f32 %v1599, %v1899
        %v1903 = vmul.f32 %v1668, %v1899
        %v1904 = vmul.f32 %v1670, %v1899
        %v1905 = vmul.f32 %v1739, %v1899
        %v1906 = vmul.f32 %v1741, %v1899
        %v1907 = vmul.f32 %v1810, %v1899
        %v1908 = vmul.f32 %v1812, %v1899
        %v1909 = vmul.f32 %v1881, %v1899
        %v1910 = vmul.f32 %v1883, %v1899
        %v1911 = vsel %vm1885, %v1597, %v1901
        %v1912 = vsel %vm1886, %v1599, %v1902
        %v1913 = vsel %vm1887, %v1668, %v1903
        %v1914 = vsel %vm1888, %v1670, %v1904
        %v1915 = vsel %vm1889, %v1739, %v1905
        %v1916 = vsel %vm1890, %v1741, %v1906
        %v1917 = vsel %vm1891, %v1810, %v1907
        %v1918 = vsel %vm1892, %v1812, %v1908
        %v1919 = vsel %vm1893, %v1881, %v1909
        %v1920 = vsel %vm1894, %v1883, %v1910
        %v1921 = vld [vmem:[#allocation4] sm:$0xff]
        %v1922 = vld [vmem:[#allocation4 + $0x8] sm:$0x3]
        %v1925 = vlaneseq
        %v1926 = vshrl.u32 %v1925, 7
        %v1927 = vsub.s32 0, %v1926
        %v1928 = vrot.slane %v1921, %v1927
        %v1929 = vlaneseq
        %v1930 = vshrl.u32 %v1929, 7
        %v1931 = vsub.s32 1, %v1930
        %v1932 = vrot.slane %v1921, %v1931
        %v1933 = vlaneseq
        %v1934 = vshrl.u32 %v1933, 7
        %v1935 = vsub.s32 2, %v1934
        %v1936 = vrot.slane %v1921, %v1935
        %v1937 = vlaneseq
        %v1938 = vshrl.u32 %v1937, 7
        %v1939 = vsub.s32 3, %v1938
        %v1940 = vrot.slane %v1921, %v1939
        %v1941 = vlaneseq
        %v1942 = vshrl.u32 %v1941, 7
        %v1943 = vsub.s32 4, %v1942
        %v1944 = vrot.slane %v1921, %v1943
        %v1945 = vlaneseq
        %v1946 = vshrl.u32 %v1945, 7
        %v1947 = vsub.s32 5, %v1946
        %v1948 = vrot.slane %v1921, %v1947
        %v1949 = vlaneseq
        %v1950 = vshrl.u32 %v1949, 7
        %v1951 = vsub.s32 6, %v1950
        %v1952 = vrot.slane %v1921, %v1951
        %v1953 = vlaneseq
        %v1954 = vshrl.u32 %v1953, 7
        %v1955 = vsub.s32 7, %v1954
        %v1956 = vrot.slane %v1921, %v1955
        %v1957 = vlaneseq
        %v1958 = vshrl.u32 %v1957, 7
        %v1959 = vsub.s32 0, %v1958
        %v1960 = vrot.slane %v1922, %v1959
        %v1961 = vlaneseq
        %v1962 = vshrl.u32 %v1961, 7
        %v1963 = vsub.s32 1, %v1962
        %v1964 = vrot.slane %v1922, %v1963
        %v1975 = vmul.f32 %v1911, %v1928
        %v1976 = vmul.f32 %v1912, %v1932
        %v1977 = vmul.f32 %v1913, %v1936
        %v1978 = vmul.f32 %v1914, %v1940
        %v1979 = vmul.f32 %v1915, %v1944
        %v1980 = vmul.f32 %v1916, %v1948
        %v1981 = vmul.f32 %v1917, %v1952
        %v1982 = vmul.f32 %v1918, %v1956
        %v1983 = vmul.f32 %v1919, %v1960
        %v1984 = vmul.f32 %v1920, %v1964
        %v1985 = vld [vmem:[%s5] sm:$0xf]
        %1996 = vrot.lane.b32.xlu0 %v1975, 127
        %v1997 = vpop.permute.xlu0 %1996
        %1998 = vrot.lane.b32.xlu0 %v1976, 127
        %v1999 = vpop.permute.xlu0 %1998
        %2000 = vrot.lane.b32.xlu0 %v1977, 127
        %v2001 = vpop.permute.xlu0 %2000
        %2002 = vrot.lane.b32.xlu0 %v1978, 127
        %v2003 = vpop.permute.xlu0 %2002
        %2004 = vrot.lane.b32.xlu0 %v1979, 127
        %v2005 = vpop.permute.xlu0 %2004
        %2006 = vrot.lane.b32.xlu0 %v1980, 127
        %v2007 = vpop.permute.xlu0 %2006
        %2008 = vrot.lane.b32.xlu0 %v1981, 127
        %v2009 = vpop.permute.xlu0 %2008
        %2010 = vrot.lane.b32.xlu0 %v1982, 127
        %v2011 = vpop.permute.xlu0 %2010
        %2012 = vrot.lane.b32.xlu0 %v1983, 127
        %v2013 = vpop.permute.xlu0 %2012
        %2014 = vrot.lane.b32.xlu0 %v1984, 127
        %v2015 = vpop.permute.xlu0 %2014
        %v2016 = vsel %vm1210, %v1997, %v1999
        %v2017 = vsel %vm1210, %v1999, %v2001
        %v2018 = vsel %vm1210, %v2001, %v2003
        %v2019 = vsel %vm1210, %v2003, %v2005
        %v2020 = vsel %vm1210, %v2005, %v2007
        %v2021 = vsel %vm1210, %v2007, %v2009
        %v2022 = vsel %vm1210, %v2009, %v2011
        %v2023 = vsel %vm1210, %v2011, %v2013
        %v2024 = vsel %vm1210, %v2013, %v2015
        %2035 = vrot.lane.b32.xlu0 %v1975, 126
        %v2036 = vpop.permute.xlu0 %2035
        %2037 = vrot.lane.b32.xlu0 %v1976, 126
        %v2038 = vpop.permute.xlu0 %2037
        %2039 = vrot.lane.b32.xlu0 %v1977, 126
        %v2040 = vpop.permute.xlu0 %2039
        %2041 = vrot.lane.b32.xlu0 %v1978, 126
        %v2042 = vpop.permute.xlu0 %2041
        %2043 = vrot.lane.b32.xlu0 %v1979, 126
        %v2044 = vpop.permute.xlu0 %2043
        %2045 = vrot.lane.b32.xlu0 %v1980, 126
        %v2046 = vpop.permute.xlu0 %2045
        %2047 = vrot.lane.b32.xlu0 %v1981, 126
        %v2048 = vpop.permute.xlu0 %2047
        %2049 = vrot.lane.b32.xlu0 %v1982, 126
        %v2050 = vpop.permute.xlu0 %2049
        %2051 = vrot.lane.b32.xlu0 %v1983, 126
        %v2052 = vpop.permute.xlu0 %2051
        %2053 = vrot.lane.b32.xlu0 %v1984, 126
        %v2054 = vpop.permute.xlu0 %2053
        %v2055 = vsel %vm1250, %v2036, %v2038
        %v2056 = vsel %vm1250, %v2038, %v2040
        %v2057 = vsel %vm1250, %v2040, %v2042
        %v2058 = vsel %vm1250, %v2042, %v2044
        %v2059 = vsel %vm1250, %v2044, %v2046
        %v2060 = vsel %vm1250, %v2046, %v2048
        %v2061 = vsel %vm1250, %v2048, %v2050
        %v2062 = vsel %vm1250, %v2050, %v2052
        %v2063 = vsel %vm1250, %v2052, %v2054
        %2074 = vrot.lane.b32.xlu0 %v1975, 94
        %v2075 = vpop.permute.xlu0 %2074
        %2076 = vrot.lane.b32.xlu0 %v1976, 94
        %v2077 = vpop.permute.xlu0 %2076
        %2078 = vrot.lane.b32.xlu0 %v1977, 94
        %v2079 = vpop.permute.xlu0 %2078
        %2080 = vrot.lane.b32.xlu0 %v1978, 94
        %v2081 = vpop.permute.xlu0 %2080
        %2082 = vrot.lane.b32.xlu0 %v1979, 94
        %v2083 = vpop.permute.xlu0 %2082
        %2084 = vrot.lane.b32.xlu0 %v1980, 94
        %v2085 = vpop.permute.xlu0 %2084
        %2086 = vrot.lane.b32.xlu0 %v1981, 94
        %v2087 = vpop.permute.xlu0 %2086
        %2088 = vrot.lane.b32.xlu0 %v1982, 94
        %v2089 = vpop.permute.xlu0 %2088
        %2090 = vrot.lane.b32.xlu0 %v1983, 94
        %v2091 = vpop.permute.xlu0 %2090
        %2092 = vrot.lane.b32.xlu0 %v1984, 94
        %v2093 = vpop.permute.xlu0 %2092
        %v2094 = vsel %vm1290, %v2075, %v2077
        %v2095 = vsel %vm1290, %v2077, %v2079
        %v2096 = vsel %vm1290, %v2079, %v2081
        %v2097 = vsel %vm1290, %v2081, %v2083
        %v2098 = vsel %vm1290, %v2083, %v2085
        %v2099 = vsel %vm1290, %v2085, %v2087
        %v2100 = vsel %vm1290, %v2087, %v2089
        %v2101 = vsel %vm1290, %v2089, %v2091
        %v2102 = vsel %vm1290, %v2091, %v2093
        %2113 = vrot.lane.b32.xlu0 %v1975, 93
        %v2114 = vpop.permute.xlu0 %2113
        %2115 = vrot.lane.b32.xlu0 %v1976, 93
        %v2116 = vpop.permute.xlu0 %2115
        %2117 = vrot.lane.b32.xlu0 %v1977, 93
        %v2118 = vpop.permute.xlu0 %2117
        %2119 = vrot.lane.b32.xlu0 %v1978, 93
        %v2120 = vpop.permute.xlu0 %2119
        %2121 = vrot.lane.b32.xlu0 %v1979, 93
        %v2122 = vpop.permute.xlu0 %2121
        %2123 = vrot.lane.b32.xlu0 %v1980, 93
        %v2124 = vpop.permute.xlu0 %2123
        %2125 = vrot.lane.b32.xlu0 %v1981, 93
        %v2126 = vpop.permute.xlu0 %2125
        %2127 = vrot.lane.b32.xlu0 %v1982, 93
        %v2128 = vpop.permute.xlu0 %2127
        %2129 = vrot.lane.b32.xlu0 %v1983, 93
        %v2130 = vpop.permute.xlu0 %2129
        %2131 = vrot.lane.b32.xlu0 %v1984, 93
        %v2132 = vpop.permute.xlu0 %2131
        %v2133 = vsel %vm1330, %v2114, %v2116
        %v2134 = vsel %vm1330, %v2116, %v2118
        %v2135 = vsel %vm1330, %v2118, %v2120
        %v2136 = vsel %vm1330, %v2120, %v2122
        %v2137 = vsel %vm1330, %v2122, %v2124
        %v2138 = vsel %vm1330, %v2124, %v2126
        %v2139 = vsel %vm1330, %v2126, %v2128
        %v2140 = vsel %vm1330, %v2128, %v2130
        %v2141 = vsel %vm1330, %v2130, %v2132
        %2152 = vrot.lane.b32.xlu0 %v1975, 92
        %v2153 = vpop.permute.xlu0 %2152
        %2154 = vrot.lane.b32.xlu0 %v1976, 92
        %v2155 = vpop.permute.xlu0 %2154
        %2156 = vrot.lane.b32.xlu0 %v1977, 92
        %v2157 = vpop.permute.xlu0 %2156
        %2158 = vrot.lane.b32.xlu0 %v1978, 92
        %v2159 = vpop.permute.xlu0 %2158
        %2160 = vrot.lane.b32.xlu0 %v1979, 92
        %v2161 = vpop.permute.xlu0 %2160
        %2162 = vrot.lane.b32.xlu0 %v1980, 92
        %v2163 = vpop.permute.xlu0 %2162
        %2164 = vrot.lane.b32.xlu0 %v1981, 92
        %v2165 = vpop.permute.xlu0 %2164
        %2166 = vrot.lane.b32.xlu0 %v1982, 92
        %v2167 = vpop.permute.xlu0 %2166
        %2168 = vrot.lane.b32.xlu0 %v1983, 92
        %v2169 = vpop.permute.xlu0 %2168
        %2170 = vrot.lane.b32.xlu0 %v1984, 92
        %v2171 = vpop.permute.xlu0 %2170
        %v2172 = vsel %vm1370, %v2153, %v2155
        %v2173 = vsel %vm1370, %v2155, %v2157
        %v2174 = vsel %vm1370, %v2157, %v2159
        %v2175 = vsel %vm1370, %v2159, %v2161
        %v2176 = vsel %vm1370, %v2161, %v2163
        %v2177 = vsel %vm1370, %v2163, %v2165
        %v2178 = vsel %vm1370, %v2165, %v2167
        %v2179 = vsel %vm1370, %v2167, %v2169
        %v2180 = vsel %vm1370, %v2169, %v2171
        %2191 = vrot.lane.b32.xlu0 %v1975, 60
        %v2192 = vpop.permute.xlu0 %2191
        %2193 = vrot.lane.b32.xlu0 %v1976, 60
        %v2194 = vpop.permute.xlu0 %2193
        %2195 = vrot.lane.b32.xlu0 %v1977, 60
        %v2196 = vpop.permute.xlu0 %2195
        %2197 = vrot.lane.b32.xlu0 %v1978, 60
        %v2198 = vpop.permute.xlu0 %2197
        %2199 = vrot.lane.b32.xlu0 %v1979, 60
        %v2200 = vpop.permute.xlu0 %2199
        %2201 = vrot.lane.b32.xlu0 %v1980, 60
        %v2202 = vpop.permute.xlu0 %2201
        %2203 = vrot.lane.b32.xlu0 %v1981, 60
        %v2204 = vpop.permute.xlu0 %2203
        %2205 = vrot.lane.b32.xlu0 %v1982, 60
        %v2206 = vpop.permute.xlu0 %2205
        %2207 = vrot.lane.b32.xlu0 %v1983, 60
        %v2208 = vpop.permute.xlu0 %2207
        %2209 = vrot.lane.b32.xlu0 %v1984, 60
        %v2210 = vpop.permute.xlu0 %2209
        %v2211 = vsel %vm1413, %v2192, %v2194
        %v2212 = vsel %vm1413, %v2194, %v2196
        %v2213 = vsel %vm1413, %v2196, %v2198
        %v2214 = vsel %vm1413, %v2198, %v2200
        %v2215 = vsel %vm1413, %v2200, %v2202
        %v2216 = vsel %vm1413, %v2202, %v2204
        %v2217 = vsel %vm1413, %v2204, %v2206
        %v2218 = vsel %vm1413, %v2206, %v2208
        %v2219 = vsel %vm1413, %v2208, %v2210
        %2230 = vrot.lane.b32.xlu0 %v1975, 59
        %v2231 = vpop.permute.xlu0 %2230
        %2232 = vrot.lane.b32.xlu0 %v1976, 59
        %v2233 = vpop.permute.xlu0 %2232
        %2234 = vrot.lane.b32.xlu0 %v1977, 59
        %v2235 = vpop.permute.xlu0 %2234
        %2236 = vrot.lane.b32.xlu0 %v1978, 59
        %v2237 = vpop.permute.xlu0 %2236
        %2238 = vrot.lane.b32.xlu0 %v1979, 59
        %v2239 = vpop.permute.xlu0 %2238
        %2240 = vrot.lane.b32.xlu0 %v1980, 59
        %v2241 = vpop.permute.xlu0 %2240
        %2242 = vrot.lane.b32.xlu0 %v1981, 59
        %v2243 = vpop.permute.xlu0 %2242
        %2244 = vrot.lane.b32.xlu0 %v1982, 59
        %v2245 = vpop.permute.xlu0 %2244
        %2246 = vrot.lane.b32.xlu0 %v1983, 59
        %v2247 = vpop.permute.xlu0 %2246
        %2248 = vrot.lane.b32.xlu0 %v1984, 59
        %v2249 = vpop.permute.xlu0 %2248
        %v2250 = vsel %vm1456, %v2231, %v2233
        %v2251 = vsel %vm1456, %v2233, %v2235
        %v2252 = vsel %vm1456, %v2235, %v2237
        %v2253 = vsel %vm1456, %v2237, %v2239
        %v2254 = vsel %vm1456, %v2239, %v2241
        %v2255 = vsel %vm1456, %v2241, %v2243
        %v2256 = vsel %vm1456, %v2243, %v2245
        %v2257 = vsel %vm1456, %v2245, %v2247
        %v2258 = vsel %vm1456, %v2247, %v2249
        %2269 = vrot.lane.b32.xlu0 %v1975, 58
        %v2270 = vpop.permute.xlu0 %2269
        %2271 = vrot.lane.b32.xlu0 %v1976, 58
        %v2272 = vpop.permute.xlu0 %2271
        %2273 = vrot.lane.b32.xlu0 %v1977, 58
        %v2274 = vpop.permute.xlu0 %2273
        %2275 = vrot.lane.b32.xlu0 %v1978, 58
        %v2276 = vpop.permute.xlu0 %2275
        %2277 = vrot.lane.b32.xlu0 %v1979, 58
        %v2278 = vpop.permute.xlu0 %2277
        %2279 = vrot.lane.b32.xlu0 %v1980, 58
        %v2280 = vpop.permute.xlu0 %2279
        %2281 = vrot.lane.b32.xlu0 %v1981, 58
        %v2282 = vpop.permute.xlu0 %2281
        %2283 = vrot.lane.b32.xlu0 %v1982, 58
        %v2284 = vpop.permute.xlu0 %2283
        %2285 = vrot.lane.b32.xlu0 %v1983, 58
        %v2286 = vpop.permute.xlu0 %2285
        %2287 = vrot.lane.b32.xlu0 %v1984, 58
        %v2288 = vpop.permute.xlu0 %2287
        %v2289 = vsel %vm1499, %v2270, %v2272
        %v2290 = vsel %vm1499, %v2272, %v2274
        %v2291 = vsel %vm1499, %v2274, %v2276
        %v2292 = vsel %vm1499, %v2276, %v2278
        %v2293 = vsel %vm1499, %v2278, %v2280
        %v2294 = vsel %vm1499, %v2280, %v2282
        %v2295 = vsel %vm1499, %v2282, %v2284
        %v2296 = vsel %vm1499, %v2284, %v2286
        %v2297 = vsel %vm1499, %v2286, %v2288
        %v2308 = vld [vmem:[%s6] sm:$0xf]
        %2310 = vset.pattern.permute.xlu0 0
        %2311 = vperm.xlu0 %2310, %v2308
        %v2312 = vpop.permute.xlu0 %2311
        %v2315 = vsel %vm1526, %v1985, 0
        %2317 = vmatprep.subr.mxu0 0.0
        %2318 = vmatpush1.msra.mxu0 0.0
        %2319 = vmatprep.subr.mxu0 0.0
        %2320 = vmatpush1.msra.mxu0 0.0
        %2321 = vmatprep.subr.mxu0 0.0
        %2322 = vmatpush1.msra.mxu0 0.0
        %2323 = vmatprep.subr.mxu0 0.0
        %2324 = vmatpush1.msra.mxu0 0.0
        %2325 = vmatprep.subr.mxu0 0.0
        %2326 = vmatpush1.msra.mxu0 0.0
        %2327 = vmatprep.subr.mxu0 0.0
        %2328 = vmatpush1.msra.mxu0 0.0
        %2329 = vmatprep.subr.mxu0 0.0
        %2330 = vmatpush1.msra.mxu0 0.0
        %2331 = vmatprep.subr.mxu0 %v2290
        %2332 = vmatpush1.msra.mxu0 %v2289
        %2333 = vmatprep.subr.mxu0 %v2251
        %2334 = vmatpush1.msra.mxu0 %v2250
        %2335 = vmatprep.subr.mxu0 %v2212
        %2336 = vmatpush1.msra.mxu0 %v2211
        %2337 = vmatprep.subr.mxu0 %v2173
        %2338 = vmatpush1.msra.mxu0 %v2172
        %2339 = vmatprep.subr.mxu0 %v2134
        %2340 = vmatpush1.msra.mxu0 %v2133
        %2341 = vmatprep.subr.mxu0 %v2095
        %2342 = vmatpush1.msra.mxu0 %v2094
        %2343 = vmatprep.subr.mxu0 %v2056
        %2344 = vmatpush1.msra.mxu0 %v2055
        %2345 = vmatprep.subr.mxu0 %v2017
        %2346 = vmatpush1.msra.mxu0 %v2016
        %2347 = vmatprep.subr.mxu0 %v1976
        %2348 = vmatpush1.msra.mxu0 %v1975
        %2349 = vmatprep.subr.mxu0 0.0
        %2350 = vmatpush2.msra.mxu0 0.0
        %2351 = vmatprep.subr.mxu0 0.0
        %2352 = vmatpush2.msra.mxu0 0.0
        %2353 = vmatprep.subr.mxu0 0.0
        %2354 = vmatpush2.msra.mxu0 0.0
        %2355 = vmatprep.subr.mxu0 0.0
        %2356 = vmatpush2.msra.mxu0 0.0
        %2357 = vmatprep.subr.mxu0 0.0
        %2358 = vmatpush2.msra.mxu0 0.0
        %2359 = vmatprep.subr.mxu0 0.0
        %2360 = vmatpush2.msra.mxu0 0.0
        %2361 = vmatprep.subr.mxu0 0.0
        %2362 = vmatpush2.msra.mxu0 0.0
        %2363 = vmatprep.subr.mxu0 0.0
        %2364 = vmatpush2.msra.mxu0 0.0
        %2365 = vmatprep.subr.mxu0 0.0
        %2366 = vmatpush2.msra.mxu0 0.0
        %2367 = vmatprep.subr.mxu0 0.0
        %2368 = vmatpush2.msra.mxu0 0.0
        %2369 = vmatprep.subr.mxu0 0.0
        %2370 = vmatpush2.msra.mxu0 0.0
        %2371 = vmatprep.subr.mxu0 0.0
        %2372 = vmatpush2.msra.mxu0 0.0
        %2373 = vmatprep.subr.mxu0 0.0
        %2374 = vmatpush2.msra.mxu0 0.0
        %2375 = vmatprep.subr.mxu0 0.0
        %2376 = vmatpush2.msra.mxu0 0.0
        %2377 = vmatprep.subr.mxu0 0.0
        %2378 = vmatpush2.msra.mxu0 0.0
        %2379 = vmatprep.subr.mxu0 0.0
        %2380 = vmatpush2.msra.mxu0 0.0
        %2381 = vmatprep.mubr.f32.mxu0 0.0
        %2382 = vmatmul.mubr.f32.gmra.mxu0 %v2315
        %v2383 = vpop.f32.mrf.mxu0
        %v2384 = vadd.f32 %v2312, %v2383
        %v2385 = vpop.f32.mrf.mxu0
        %v2386 = vadd.f32 %v2312, %v2385
        %2387 = vdwg.mxu0
        %2388 = vmatprep.subr.mxu0 0.0
        %2389 = vmatpush1.msra.mxu0 0.0
        %2390 = vmatprep.subr.mxu0 0.0
        %2391 = vmatpush1.msra.mxu0 0.0
        %2392 = vmatprep.subr.mxu0 0.0
        %2393 = vmatpush1.msra.mxu0 0.0
        %2394 = vmatprep.subr.mxu0 0.0
        %2395 = vmatpush1.msra.mxu0 0.0
        %2396 = vmatprep.subr.mxu0 0.0
        %2397 = vmatpush1.msra.mxu0 0.0
        %2398 = vmatprep.subr.mxu0 0.0
        %2399 = vmatpush1.msra.mxu0 0.0
        %2400 = vmatprep.subr.mxu0 0.0
        %2401 = vmatpush1.msra.mxu0 0.0
        %2402 = vmatprep.subr.mxu0 %v2292
        %2403 = vmatpush1.msra.mxu0 %v2291
        %2404 = vmatprep.subr.mxu0 %v2253
        %2405 = vmatpush1.msra.mxu0 %v2252
        %2406 = vmatprep.subr.mxu0 %v2214
        %2407 = vmatpush1.msra.mxu0 %v2213
        %2408 = vmatprep.subr.mxu0 %v2175
        %2409 = vmatpush1.msra.mxu0 %v2174
        %2410 = vmatprep.subr.mxu0 %v2136
        %2411 = vmatpush1.msra.mxu0 %v2135
        %2412 = vmatprep.subr.mxu0 %v2097
        %2413 = vmatpush1.msra.mxu0 %v2096
        %2414 = vmatprep.subr.mxu0 %v2058
        %2415 = vmatpush1.msra.mxu0 %v2057
        %2416 = vmatprep.subr.mxu0 %v2019
        %2417 = vmatpush1.msra.mxu0 %v2018
        %2418 = vmatprep.subr.mxu0 %v1978
        %2419 = vmatpush1.msra.mxu0 %v1977
        %2420 = vmatprep.subr.mxu0 0.0
        %2421 = vmatpush2.msra.mxu0 0.0
        %2422 = vmatprep.subr.mxu0 0.0
        %2423 = vmatpush2.msra.mxu0 0.0
        %2424 = vmatprep.subr.mxu0 0.0
        %2425 = vmatpush2.msra.mxu0 0.0
        %2426 = vmatprep.subr.mxu0 0.0
        %2427 = vmatpush2.msra.mxu0 0.0
        %2428 = vmatprep.subr.mxu0 0.0
        %2429 = vmatpush2.msra.mxu0 0.0
        %2430 = vmatprep.subr.mxu0 0.0
        %2431 = vmatpush2.msra.mxu0 0.0
        %2432 = vmatprep.subr.mxu0 0.0
        %2433 = vmatpush2.msra.mxu0 0.0
        %2434 = vmatprep.subr.mxu0 0.0
        %2435 = vmatpush2.msra.mxu0 0.0
        %2436 = vmatprep.subr.mxu0 0.0
        %2437 = vmatpush2.msra.mxu0 0.0
        %2438 = vmatprep.subr.mxu0 0.0
        %2439 = vmatpush2.msra.mxu0 0.0
        %2440 = vmatprep.subr.mxu0 0.0
        %2441 = vmatpush2.msra.mxu0 0.0
        %2442 = vmatprep.subr.mxu0 0.0
        %2443 = vmatpush2.msra.mxu0 0.0
        %2444 = vmatprep.subr.mxu0 0.0
        %2445 = vmatpush2.msra.mxu0 0.0
        %2446 = vmatprep.subr.mxu0 0.0
        %2447 = vmatpush2.msra.mxu0 0.0
        %2448 = vmatprep.subr.mxu0 0.0
        %2449 = vmatpush2.msra.mxu0 0.0
        %2450 = vmatprep.subr.mxu0 0.0
        %2451 = vmatpush2.msra.mxu0 0.0
        %2452 = vmatprep.mubr.f32.mxu0 0.0
        %2453 = vmatmul.mubr.f32.gmra.mxu0 %v2315
        %v2454 = vpop.f32.mrf.mxu0
        %v2455 = vadd.f32 %v2312, %v2454
        %v2456 = vpop.f32.mrf.mxu0
        %v2457 = vadd.f32 %v2312, %v2456
        %2458 = vdwg.mxu0
        %2459 = vmatprep.subr.mxu0 0.0
        %2460 = vmatpush1.msra.mxu0 0.0
        %2461 = vmatprep.subr.mxu0 0.0
        %2462 = vmatpush1.msra.mxu0 0.0
        %2463 = vmatprep.subr.mxu0 0.0
        %2464 = vmatpush1.msra.mxu0 0.0
        %2465 = vmatprep.subr.mxu0 0.0
        %2466 = vmatpush1.msra.mxu0 0.0
        %2467 = vmatprep.subr.mxu0 0.0
        %2468 = vmatpush1.msra.mxu0 0.0
        %2469 = vmatprep.subr.mxu0 0.0
        %2470 = vmatpush1.msra.mxu0 0.0
        %2471 = vmatprep.subr.mxu0 0.0
        %2472 = vmatpush1.msra.mxu0 0.0
        %2473 = vmatprep.subr.mxu0 %v2294
        %2474 = vmatpush1.msra.mxu0 %v2293
        %2475 = vmatprep.subr.mxu0 %v2255
        %2476 = vmatpush1.msra.mxu0 %v2254
        %2477 = vmatprep.subr.mxu0 %v2216
        %2478 = vmatpush1.msra.mxu0 %v2215
        %2479 = vmatprep.subr.mxu0 %v2177
        %2480 = vmatpush1.msra.mxu0 %v2176
        %2481 = vmatprep.subr.mxu0 %v2138
        %2482 = vmatpush1.msra.mxu0 %v2137
        %2483 = vmatprep.subr.mxu0 %v2099
        %2484 = vmatpush1.msra.mxu0 %v2098
        %2485 = vmatprep.subr.mxu0 %v2060
        %2486 = vmatpush1.msra.mxu0 %v2059
        %2487 = vmatprep.subr.mxu0 %v2021
        %2488 = vmatpush1.msra.mxu0 %v2020
        %2489 = vmatprep.subr.mxu0 %v1980
        %2490 = vmatpush1.msra.mxu0 %v1979
        %2491 = vmatprep.subr.mxu0 0.0
        %2492 = vmatpush2.msra.mxu0 0.0
        %2493 = vmatprep.subr.mxu0 0.0
        %2494 = vmatpush2.msra.mxu0 0.0
        %2495 = vmatprep.subr.mxu0 0.0
        %2496 = vmatpush2.msra.mxu0 0.0
        %2497 = vmatprep.subr.mxu0 0.0
        %2498 = vmatpush2.msra.mxu0 0.0
        %2499 = vmatprep.subr.mxu0 0.0
        %2500 = vmatpush2.msra.mxu0 0.0
        %2501 = vmatprep.subr.mxu0 0.0
        %2502 = vmatpush2.msra.mxu0 0.0
        %2503 = vmatprep.subr.mxu0 0.0
        %2504 = vmatpush2.msra.mxu0 0.0
        %2505 = vmatprep.subr.mxu0 0.0
        %2506 = vmatpush2.msra.mxu0 0.0
        %2507 = vmatprep.subr.mxu0 0.0
        %2508 = vmatpush2.msra.mxu0 0.0
        %2509 = vmatprep.subr.mxu0 0.0
        %2510 = vmatpush2.msra.mxu0 0.0
        %2511 = vmatprep.subr.mxu0 0.0
        %2512 = vmatpush2.msra.mxu0 0.0
        %2513 = vmatprep.subr.mxu0 0.0
        %2514 = vmatpush2.msra.mxu0 0.0
        %2515 = vmatprep.subr.mxu0 0.0
        %2516 = vmatpush2.msra.mxu0 0.0
        %2517 = vmatprep.subr.mxu0 0.0
        %2518 = vmatpush2.msra.mxu0 0.0
        %2519 = vmatprep.subr.mxu0 0.0
        %2520 = vmatpush2.msra.mxu0 0.0
        %2521 = vmatprep.subr.mxu0 0.0
        %2522 = vmatpush2.msra.mxu0 0.0
        %2523 = vmatprep.mubr.f32.mxu0 0.0
        %2524 = vmatmul.mubr.f32.gmra.mxu0 %v2315
        %v2525 = vpop.f32.mrf.mxu0
        %v2526 = vadd.f32 %v2312, %v2525
        %v2527 = vpop.f32.mrf.mxu0
        %v2528 = vadd.f32 %v2312, %v2527
        %2529 = vdwg.mxu0
        %2530 = vmatprep.subr.mxu0 0.0
        %2531 = vmatpush1.msra.mxu0 0.0
        %2532 = vmatprep.subr.mxu0 0.0
        %2533 = vmatpush1.msra.mxu0 0.0
        %2534 = vmatprep.subr.mxu0 0.0
        %2535 = vmatpush1.msra.mxu0 0.0
        %2536 = vmatprep.subr.mxu0 0.0
        %2537 = vmatpush1.msra.mxu0 0.0
        %2538 = vmatprep.subr.mxu0 0.0
        %2539 = vmatpush1.msra.mxu0 0.0
        %2540 = vmatprep.subr.mxu0 0.0
        %2541 = vmatpush1.msra.mxu0 0.0
        %2542 = vmatprep.subr.mxu0 0.0
        %2543 = vmatpush1.msra.mxu0 0.0
        %2544 = vmatprep.subr.mxu0 %v2296
        %2545 = vmatpush1.msra.mxu0 %v2295
        %2546 = vmatprep.subr.mxu0 %v2257
        %2547 = vmatpush1.msra.mxu0 %v2256
        %2548 = vmatprep.subr.mxu0 %v2218
        %2549 = vmatpush1.msra.mxu0 %v2217
        %2550 = vmatprep.subr.mxu0 %v2179
        %2551 = vmatpush1.msra.mxu0 %v2178
        %2552 = vmatprep.subr.mxu0 %v2140
        %2553 = vmatpush1.msra.mxu0 %v2139
        %2554 = vmatprep.subr.mxu0 %v2101
        %2555 = vmatpush1.msra.mxu0 %v2100
        %2556 = vmatprep.subr.mxu0 %v2062
        %2557 = vmatpush1.msra.mxu0 %v2061
        %2558 = vmatprep.subr.mxu0 %v2023
        %2559 = vmatpush1.msra.mxu0 %v2022
        %2560 = vmatprep.subr.mxu0 %v1982
        %2561 = vmatpush1.msra.mxu0 %v1981
        %2562 = vmatprep.subr.mxu0 0.0
        %2563 = vmatpush2.msra.mxu0 0.0
        %2564 = vmatprep.subr.mxu0 0.0
        %2565 = vmatpush2.msra.mxu0 0.0
        %2566 = vmatprep.subr.mxu0 0.0
        %2567 = vmatpush2.msra.mxu0 0.0
        %2568 = vmatprep.subr.mxu0 0.0
        %2569 = vmatpush2.msra.mxu0 0.0
        %2570 = vmatprep.subr.mxu0 0.0
        %2571 = vmatpush2.msra.mxu0 0.0
        %2572 = vmatprep.subr.mxu0 0.0
        %2573 = vmatpush2.msra.mxu0 0.0
        %2574 = vmatprep.subr.mxu0 0.0
        %2575 = vmatpush2.msra.mxu0 0.0
        %2576 = vmatprep.subr.mxu0 0.0
        %2577 = vmatpush2.msra.mxu0 0.0
        %2578 = vmatprep.subr.mxu0 0.0
        %2579 = vmatpush2.msra.mxu0 0.0
        %2580 = vmatprep.subr.mxu0 0.0
        %2581 = vmatpush2.msra.mxu0 0.0
        %2582 = vmatprep.subr.mxu0 0.0
        %2583 = vmatpush2.msra.mxu0 0.0
        %2584 = vmatprep.subr.mxu0 0.0
        %2585 = vmatpush2.msra.mxu0 0.0
        %2586 = vmatprep.subr.mxu0 0.0
        %2587 = vmatpush2.msra.mxu0 0.0
        %2588 = vmatprep.subr.mxu0 0.0
        %2589 = vmatpush2.msra.mxu0 0.0
        %2590 = vmatprep.subr.mxu0 0.0
        %2591 = vmatpush2.msra.mxu0 0.0
        %2592 = vmatprep.subr.mxu0 0.0
        %2593 = vmatpush2.msra.mxu0 0.0
        %2594 = vmatprep.mubr.f32.mxu0 0.0
        %2595 = vmatmul.mubr.f32.gmra.mxu0 %v2315
        %v2596 = vpop.f32.mrf.mxu0
        %v2597 = vadd.f32 %v2312, %v2596
        %v2598 = vpop.f32.mrf.mxu0
        %v2599 = vadd.f32 %v2312, %v2598
        %2600 = vdwg.mxu0
        %2601 = vmatprep.subr.mxu0 0.0
        %2602 = vmatpush1.msra.mxu0 0.0
        %2603 = vmatprep.subr.mxu0 0.0
        %2604 = vmatpush1.msra.mxu0 0.0
        %2605 = vmatprep.subr.mxu0 0.0
        %2606 = vmatpush1.msra.mxu0 0.0
        %2607 = vmatprep.subr.mxu0 0.0
        %2608 = vmatpush1.msra.mxu0 0.0
        %2609 = vmatprep.subr.mxu0 0.0
        %2610 = vmatpush1.msra.mxu0 0.0
        %2611 = vmatprep.subr.mxu0 0.0
        %2612 = vmatpush1.msra.mxu0 0.0
        %2613 = vmatprep.subr.mxu0 0.0
        %2614 = vmatpush1.msra.mxu0 0.0
        %2615 = vmatprep.subr.mxu0 %v2288
        %2616 = vmatpush1.msra.mxu0 %v2297
        %2617 = vmatprep.subr.mxu0 %v2249
        %2618 = vmatpush1.msra.mxu0 %v2258
        %2619 = vmatprep.subr.mxu0 %v2210
        %2620 = vmatpush1.msra.mxu0 %v2219
        %2621 = vmatprep.subr.mxu0 %v2171
        %2622 = vmatpush1.msra.mxu0 %v2180
        %2623 = vmatprep.subr.mxu0 %v2132
        %2624 = vmatpush1.msra.mxu0 %v2141
        %2625 = vmatprep.subr.mxu0 %v2093
        %2626 = vmatpush1.msra.mxu0 %v2102
        %2627 = vmatprep.subr.mxu0 %v2054
        %2628 = vmatpush1.msra.mxu0 %v2063
        %2629 = vmatprep.subr.mxu0 %v2015
        %2630 = vmatpush1.msra.mxu0 %v2024
        %2631 = vmatprep.subr.mxu0 %v1984
        %2632 = vmatpush1.msra.mxu0 %v1983
        %2633 = vmatprep.subr.mxu0 0.0
        %2634 = vmatpush2.msra.mxu0 0.0
        %2635 = vmatprep.subr.mxu0 0.0
        %2636 = vmatpush2.msra.mxu0 0.0
        %2637 = vmatprep.subr.mxu0 0.0
        %2638 = vmatpush2.msra.mxu0 0.0
        %2639 = vmatprep.subr.mxu0 0.0
        %2640 = vmatpush2.msra.mxu0 0.0
        %2641 = vmatprep.subr.mxu0 0.0
        %2642 = vmatpush2.msra.mxu0 0.0
        %2643 = vmatprep.subr.mxu0 0.0
        %2644 = vmatpush2.msra.mxu0 0.0
        %2645 = vmatprep.subr.mxu0 0.0
        %2646 = vmatpush2.msra.mxu0 0.0
        %2647 = vmatprep.subr.mxu0 0.0
        %2648 = vmatpush2.msra.mxu0 0.0
        %2649 = vmatprep.subr.mxu0 0.0
        %2650 = vmatpush2.msra.mxu0 0.0
        %2651 = vmatprep.subr.mxu0 0.0
        %2652 = vmatpush2.msra.mxu0 0.0
        %2653 = vmatprep.subr.mxu0 0.0
        %2654 = vmatpush2.msra.mxu0 0.0
        %2655 = vmatprep.subr.mxu0 0.0
        %2656 = vmatpush2.msra.mxu0 0.0
        %2657 = vmatprep.subr.mxu0 0.0
        %2658 = vmatpush2.msra.mxu0 0.0
        %2659 = vmatprep.subr.mxu0 0.0
        %2660 = vmatpush2.msra.mxu0 0.0
        %2661 = vmatprep.subr.mxu0 0.0
        %2662 = vmatpush2.msra.mxu0 0.0
        %2663 = vmatprep.subr.mxu0 0.0
        %2664 = vmatpush2.msra.mxu0 0.0
        %2665 = vmatprep.mubr.f32.mxu0 0.0
        %2666 = vmatmul.mubr.f32.gmra.mxu0 %v2315
        %v2667 = vpop.f32.mrf.mxu0
        %v2668 = vadd.f32 %v2312, %v2667
        %v2669 = vpop.f32.mrf.mxu0
        %v2670 = vadd.f32 %v2312, %v2669
        %2671 = vdwg.mxu0
        %v2682 = vcombine.low %v2384, %v2386
        %v2683 = vcombine.low %v2455, %v2457
        %v2684 = vcombine.low %v2526, %v2528
        %v2685 = vcombine.low %v2597, %v2599
        %v2686 = vcombine.low %v2668, %v2670
        %2692 = vst [vmem:[%s360] sm:$0xff] %v2682
        %2693 = vst [vmem:[%s360 + $0x8] sm:$0xff] %v2683
        %2694 = vst [vmem:[%s360 + $0x10] sm:$0xff] %v2684
        %2695 = vst [vmem:[%s360 + $0x18] sm:$0xff] %v2685
        %vm2696 = vcmask 1043456
        %vm2697 = vcmask 31748
        %vm2698 = vmor %vm2697, %vm2696
        %2699 = vst.msk [vmem:[%s360 + $0x20] sm:$0xff] %vm2698, %v2686
        %p2700 = scmp.lt.s32.totalorder %s22, 1
        %s2701 = scalar_select %p2700, %s22, 1
        %s2702 = smul.addr %s2701, 10
        %s2703 = smul.addr %s2702, 4
        %s2704 = scalar_lea.vmem %s9, %s2703
        // Predicated region
        $region65: #{upsample_module.1} parent=55 // pred_check
          %p2705 = pneg %p234
        $region66: #{upsample_module.1} parent=55 // pred_check_branch
          %2707 = sbr.rel (%p2705) target = $region68
        $region67: #{upsample_module.1} parent=55 // pred_region
          _
        $region68: #{upsample_module.1} parent=55 // pred_fallthru
          _
      $region56: #{upsample_module.1} parent=5 // pred_fallthru
        _
      %p2708 = scmp.le.s32.totalorder 2, %s17
      // Predicated region
      $region69: #{upsample_module.1} parent=5 // pred_check
        %p2709 = pneg %p2708
      $region70: #{upsample_module.1} parent=5 // pred_check_branch
        %2711 = sbr.rel (%p2709) target = $region72
      $region71: #{upsample_module.1} parent=5 // pred_region
        %s2712 = ssub.s32 %s17, 2
        // Predicated region
        $region73: #{upsample_module.1} parent=71 // pred_check
          %p2713 = pneg %p240
        $region74: #{upsample_module.1} parent=71 // pred_check_branch
          %2715 = sbr.rel (%p2713) target = $region76
        $region75: #{upsample_module.1} parent=71 // pred_region
          %p2716 = scmp.lt.s32.totalorder %s23, 1
          %s2717 = scalar_select %p2716, %s23, 1
          %s2718 = smul.addr %s2717, 10
          %s2719 = smul.addr %s2718, 4
          %s2720 = scalar_lea.vmem %s9, %s2719
        $region76: #{upsample_module.1} parent=71 // pred_fallthru
          _
      $region72: #{upsample_module.1} parent=5 // pred_fallthru
        _
    $region6: #{upsample_module.1} parent=1 // loop_footer
      %s21 = sadd.s32 1, %s17
    $region7: #{upsample_module.1} parent=1 // loop_footer_branch
      %16 = sbr.rel target = $region3
    $region8: #{upsample_module.1} parent=1 // loop_exit
      _
    %2721 = vsyncpa [#allocation3], 1
    %s2722 = scalar_lea.sflag [#allocation3], 1
    %2723 = vsyncpa %s2722, 1
    %2724 = vsyncpa [#allocation5], 1

</llo_original>
